<compile_context>
chip_gen: v5e
topology: v5e:2x2
jax: 0.10.0
libtpu: 0.0.40
codegen_flags: <defaults>
</compile_context>

<pallas_src>
import jax
import jax.numpy as jnp
from jax.experimental import pallas as pl
from jax.experimental.pallas import tpu as pltpu

NEG_SLOPE = 0.01  # torch.nn.LeakyReLU default


def _leaky_relu(x):
    return jnp.where(x > 0, x, NEG_SLOPE * x)


def _round_up(x, m):
    return (x + m - 1) // m * m


# ---------------------------------------------------------------------------
# Pallas kernel: fused 4-layer MLP, transposed layout (features x batch-tile).
# ---------------------------------------------------------------------------
def _make_mlp_kernel(act_dtype):
    def kernel(x_ref,            # (Fp, tm)   bf16  (row F is all-ones: fc1 bias row)
               w1_ref,           # (128, Fp)  bf16  (b1 folded into column F)
               w2_ref, b2_ref,   # (256, 128) bf16, (256, tm) act_dtype
               w3_ref, b3_ref,   # (128, 256) bf16, (128, tm) act_dtype
               w4_ref, b4_ref,   # (128, tm)  f32,  (1, tm)   f32
               o_ref):           # (1, tm)    f32
        x = x_ref[...]

        # fc1 (765 -> 128): bias comes out of the MXU via the all-ones pad row.
        a1 = jnp.dot(w1_ref[...], x, preferred_element_type=jnp.float32)
        h1 = _leaky_relu(a1.astype(act_dtype))                          # (128, tm)

        # fc2 (128 -> 256)
        a2 = jnp.dot(w2_ref[...], h1.astype(jnp.bfloat16),
                     preferred_element_type=jnp.float32)
        h2 = _leaky_relu(a2.astype(act_dtype) + b2_ref[...])            # (256, tm)

        # fc3 (256 -> 128)
        a3 = jnp.dot(w3_ref[...], h2.astype(jnp.bfloat16),
                     preferred_element_type=jnp.float32)
        h3 = _leaky_relu(a3.astype(act_dtype) + b3_ref[...])            # (128, tm)

        # fc4 (128 -> 1): VPU multiply + sublane reduce -> lane-dense (1, tm) row.
        out = jnp.sum(h3.astype(jnp.float32) * w4_ref[...],
                      axis=0, keepdims=True) + b4_ref[...]
        o_ref[...] = out.astype(o_ref.dtype)

    return kernel


def _act_dtype():
    """bf16 elementwise path on v6e/v7x (bf16 VALUs); f32 on older generations."""
    try:
        kind = jax.devices()[0].device_kind.lower()
    except Exception:  # pragma: no cover
        return jnp.float32
    return jnp.bfloat16 if ("v6" in kind or "v7" in kind) else jnp.float32


def _choose_tm(B):
    """Batch tile (lane axis of every matmul). Small B: no wasted lanes beyond
    128-alignment. Large B: big tiles to amortize the ~0.35us per-grid-step overhead,
    while keeping >=2 grid steps so both v7x TensorCores get work."""
    Bp = _round_up(B, 128)
    if Bp <= 256:
        return Bp
    for tm in (1024, 512, 256):
        if Bp % tm == 0 and Bp // tm >= 2:
            return tm
    return 128


def mlp_forward(featsT, params, *, tm=None, act_dtype=None):
    """featsT: [765, B] f32 (features-major). Fused 765->128->256->128->1 MLP.

    params: list of (w, b) in PyTorch nn.Linear orientation (w: [out, in], b: [out]).
    Returns [B, 1] f32.
    """
    (w1, b1), (w2, b2), (w3, b3), (w4, b4) = params
    F, B = featsT.shape
    n1, n2, n3 = w1.shape[0], w2.shape[0], w3.shape[0]  # 128, 256, 128
    assert w1.shape[1] == F

    if act_dtype is None:
        act_dtype = _act_dtype()
    if tm is None:
        tm = _choose_tm(B)
    assert tm % 128 == 0, "batch tile must be a multiple of the 128-lane width"

    Fp = _round_up(F + 1, 128)          # 765 (+1 bias row) -> 768
    Bp = _round_up(B, tm)

    # [Fp, Bp] bf16, batch on lanes. Row F is all-ones so the existing K=768 MXU pass
    # also applies fc1's bias; the remaining pad rows / batch columns are zero.
    xT = jnp.concatenate([
        featsT.astype(jnp.bfloat16),
        jnp.ones((1, B), jnp.bfloat16),
        jnp.zeros((Fp - F - 1, B), jnp.bfloat16),
    ], axis=0)
    if Bp != B:
        xT = jnp.pad(xT, ((0, 0), (0, Bp - B)))

    # fc1 weights with b1 folded into column F (matching the all-ones row of xT).
    w1p = jnp.concatenate([
        w1.astype(jnp.bfloat16),
        b1.reshape(-1, 1).astype(jnp.bfloat16),
        jnp.zeros((n1, Fp - F - 1), jnp.bfloat16),
    ], axis=1)
    w2b = w2.astype(jnp.bfloat16)
    w3b = w3.astype(jnp.bfloat16)

    # Remaining biases / fc4 weights pre-broadcast to tm lanes -> vreg-aligned adds.
    b2t = jnp.broadcast_to(b2.astype(act_dtype).reshape(-1, 1), (n2, tm))
    b3t = jnp.broadcast_to(b3.astype(act_dtype).reshape(-1, 1), (n3, tm))
    w4t = jnp.broadcast_to(w4.astype(jnp.float32).reshape(-1, 1), (n3, tm))
    b4t = jnp.broadcast_to(b4.astype(jnp.float32).reshape(1, 1), (1, tm))

    def const(shape):
        return pl.BlockSpec(shape, lambda i: (0, 0))

    out = pl.pallas_call(
        _make_mlp_kernel(act_dtype),
        out_shape=jax.ShapeDtypeStruct((1, Bp), jnp.float32),
        grid_spec=pltpu.PrefetchScalarGridSpec(
            num_scalar_prefetch=0,
            grid=(Bp // tm,),
            in_specs=[
                pl.BlockSpec((Fp, tm), lambda i: (0, i)),   # x tile, batch on lanes
                const((n1, Fp)),
                const((n2, n1)), const((n2, tm)),
                const((n3, n2)), const((n3, tm)),
                const((n3, tm)), const((1, tm)),
            ],
            out_specs=pl.BlockSpec((1, tm), lambda i: (0, i)),  # lane-dense output
        ),
        compiler_params=pltpu.CompilerParams(
            dimension_semantics=("parallel",)),
    )(xT, w1p, w2b, b2t, w3b, b3t, w4t, b4t)

    return out[0, :B].reshape(B, 1)


# ---------------------------------------------------------------------------
# MaxPool pyramid front-end, collapsed to one window-max per level.
# ---------------------------------------------------------------------------
def _window_max(x, k):
    """Max over non-overlapping k x k windows (kernel == stride, floor mode), NCHW."""
    b, c, h, w = x.shape
    ho, wo = h // k, w // k
    x = x[:, :, :ho * k, :wo * k]
    return x.reshape(b, c, ho, k, wo, k).max(axis=(3, 5))


# TODO(synk): the front-end stays as a single-pass XLA window-max per pyramid level
# (memory-bound reduction); a dedicated Pallas reduce kernel writing the 765-wide
# feature column directly would only save the small per-level concat/transpose.
def extract_features_T(p):
    """Collapsed pyramid: chained kernel==stride pools compose exactly (floor division
    composes), so mp1^3 . mp2 == one 80x80 max, mp1^2 . mp2 == 40x40, mp1 . mp2 == 20x20.
    Returns the feature matrix transposed: [765, bs]."""
    p0, p1, p2 = p
    bs = p0.shape[0]
    w, h = p0.shape[2], p0.shape[3]

    levels = [
        (p0.reshape(bs, -1, w, h),           2 * 2 * 2 * 10),
        (p1.reshape(bs, -1, w // 2, h // 2), 2 * 2 * 10),
        (p2.reshape(bs, -1, w // 4, h // 4), 2 * 10),
    ]
    cols = []
    for x, k in levels:
        f = _window_max(x, k)                 # (bs, C, ho, wo), single reduce pass
        cols.append(f.reshape(bs, -1).T)      # (C*ho*wo, bs) -- matches torch flatten
    return jnp.concatenate(cols, axis=0)      # (765, bs)


def forward_a(p, params, *, tm=None):
    """Full module-A forward: collapsed maxpool pyramid -> Pallas fused MLP."""
    return mlp_forward(extract_features_T(p), params, tm=tm)


# ---------------------------------------------------------------------------
# Params / reference (reference keeps the original chained-pool formulation).
# ---------------------------------------------------------------------------
def init_params(key):
    """torch.nn.Linear-style init: U(-1/sqrt(fan_in), 1/sqrt(fan_in)), w: [out, in]."""
    dims = [(765, 128), (128, 256), (256, 128), (128, 1)]
    params = []
    for fan_in, fan_out in dims:
        key, kw, kb = jax.random.split(key, 3)
        bound = 1.0 / (fan_in ** 0.5)
        w = jax.random.uniform(kw, (fan_out, fan_in), jnp.float32, -bound, bound)
        b = jax.random.uniform(kb, (fan_out,), jnp.float32, -bound, bound)
        params.append((w, b))
    return params


def reference_forward(p, params):
    """Pure-jnp float32 reference following the torch forward op-for-op."""
    p0, p1, p2 = p
    bs = p0.shape[0]
    w, h = p0.shape[2], p0.shape[3]

    x1 = p0.reshape(bs, -1, w, h)
    for _ in range(3):
        x1 = _window_max(x1, 2)
    x2 = p1.reshape(bs, -1, w // 2, h // 2)
    for _ in range(2):
        x2 = _window_max(x2, 2)
    x3 = _window_max(p2.reshape(bs, -1, w // 4, h // 4), 2)

    x = _window_max(jnp.concatenate([x1, x2, x3], axis=1), 10)
    x = x.reshape(bs, -1)
    for idx, (wt, bi) in enumerate(params):
        x = x @ wt.T + bi
        if idx < len(params) - 1:
            x = _leaky_relu(x)
    return x


if __name__ == "__main__":
    key = jax.random.PRNGKey(0)
    kp, k0, k1, k2 = jax.random.split(key, 4)

    bs = 2
    # Smallest spatial size the module admits: three 2x2 pools followed by the
    # 10x10 pool require w = h = 80.  fc1's 765 inputs = 3 pyramid levels x 255
    # channels (255 = 3 anchors x 85), i.e. YOLO-style detection heads.
    p = [
        jax.random.normal(k0, (bs, 3, 80, 80, 85), jnp.float32),
        jax.random.normal(k1, (bs, 3, 40, 40, 85), jnp.float32),
        jax.random.normal(k2, (bs, 3, 20, 20, 85), jnp.float32),
    ]
    params = init_params(kp)

    out = jax.block_until_ready(forward_a(p, params))
    ref = reference_forward(p, params)

    assert out.shape == (bs, 1), out.shape
    # bf16 MXU inputs (+ bf16 activations on v6e/v7x) with f32 accumulation =>
    # looser tolerance than pure f32.
    assert jnp.allclose(out, ref, atol=5e-2, rtol=5e-2), (out, ref)

    print("KERNEL_OK")
</pallas_src>

<mosaic_0001>
module attributes {stable_mosaic.version = 11 : i64} {
  func.func @kernel(%arg0: i32, %arg1: memref<768x128xbf16, #tpu.memory_space<vmem>>, %arg2: memref<128x768xbf16, #tpu.memory_space<vmem>>, %arg3: memref<256x128xbf16, #tpu.memory_space<vmem>>, %arg4: memref<256x128xf32, #tpu.memory_space<vmem>>, %arg5: memref<128x256xbf16, #tpu.memory_space<vmem>>, %arg6: memref<128x128xf32, #tpu.memory_space<vmem>>, %arg7: memref<128x128xf32, #tpu.memory_space<vmem>>, %arg8: memref<1x128xf32, #tpu.memory_space<vmem>>, %arg9: memref<1x128xf32, #tpu.memory_space<vmem>>) attributes {dimension_semantics = [#tpu.dimension_semantics<parallel>], iteration_bounds = array<i64: 1>, scalar_prefetch = 0 : i64, scratch_operands = 0 : i64, tpu.core_type = #tpu.core_type<tc>, window_params = [{transform_indices = @transform_0, window_bounds = array<i64: 768, 128>}, {pipeline_mode = #tpu.pipeline_mode<synchronous>, transform_indices = @transform_1, window_bounds = array<i64: 128, 768>}, {pipeline_mode = #tpu.pipeline_mode<synchronous>, transform_indices = @transform_2, window_bounds = array<i64: 256, 128>}, {pipeline_mode = #tpu.pipeline_mode<synchronous>, transform_indices = @transform_3, window_bounds = array<i64: 256, 128>}, {pipeline_mode = #tpu.pipeline_mode<synchronous>, transform_indices = @transform_4, window_bounds = array<i64: 128, 256>}, {pipeline_mode = #tpu.pipeline_mode<synchronous>, transform_indices = @transform_5, window_bounds = array<i64: 128, 128>}, {pipeline_mode = #tpu.pipeline_mode<synchronous>, transform_indices = @transform_6, window_bounds = array<i64: 128, 128>}, {pipeline_mode = #tpu.pipeline_mode<synchronous>, transform_indices = @transform_7, window_bounds = array<i64: 1, 128>}, {transform_indices = @transform_8, window_bounds = array<i64: 1, 128>}]} {
    %c0 = arith.constant 0 : index
    %c0_0 = arith.constant 0 : index
    %0 = vector.load %arg1[%c0, %c0_0] : memref<768x128xbf16, #tpu.memory_space<vmem>>, vector<768x128xbf16>
    %c0_1 = arith.constant 0 : index
    %c0_2 = arith.constant 0 : index
    %1 = vector.load %arg2[%c0_1, %c0_2] : memref<128x768xbf16, #tpu.memory_space<vmem>>, vector<128x768xbf16>
    %cst = arith.constant dense<0.000000e+00> : vector<128x128xf32>
    %2 = tpu.matmul %1, %0, %cst {dimension_numbers = #tpu.dot_dimension_numbers<[1], [0], [0], [1], [0, 0, 1, 1], [], []>} : vector<128x768xbf16>, vector<768x128xbf16>, vector<128x128xf32> -> vector<128x128xf32>
    %cst_3 = arith.constant 0.000000e+00 : f32
    %3 = vector.broadcast %cst_3 : f32 to vector<128x128xf32>
    %4 = arith.cmpf ogt, %2, %3 : vector<128x128xf32>
    %cst_4 = arith.constant 0.00999999977 : f32
    %5 = vector.broadcast %cst_4 : f32 to vector<128x128xf32>
    %6 = arith.mulf %5, %2 : vector<128x128xf32>
    %7 = arith.select %4, %2, %6 : vector<128x128xi1>, vector<128x128xf32>
    %c0_5 = arith.constant 0 : index
    %c0_6 = arith.constant 0 : index
    %8 = vector.load %arg3[%c0_5, %c0_6] : memref<256x128xbf16, #tpu.memory_space<vmem>>, vector<256x128xbf16>
    %9 = arith.truncf %7 : vector<128x128xf32> to vector<128x128xbf16>
    %cst_7 = arith.constant dense<0.000000e+00> : vector<256x128xf32>
    %10 = tpu.matmul %8, %9, %cst_7 {dimension_numbers = #tpu.dot_dimension_numbers<[1], [0], [0], [1], [0, 0, 1, 1], [], []>} : vector<256x128xbf16>, vector<128x128xbf16>, vector<256x128xf32> -> vector<256x128xf32>
    %c0_8 = arith.constant 0 : index
    %c0_9 = arith.constant 0 : index
    %11 = vector.load %arg4[%c0_8, %c0_9] : memref<256x128xf32, #tpu.memory_space<vmem>>, vector<256x128xf32>
    %12 = arith.addf %10, %11 : vector<256x128xf32>
    %cst_10 = arith.constant 0.000000e+00 : f32
    %13 = vector.broadcast %cst_10 : f32 to vector<256x128xf32>
    %14 = arith.cmpf ogt, %12, %13 : vector<256x128xf32>
    %cst_11 = arith.constant 0.00999999977 : f32
    %15 = vector.broadcast %cst_11 : f32 to vector<256x128xf32>
    %16 = arith.mulf %15, %12 : vector<256x128xf32>
    %17 = arith.select %14, %12, %16 : vector<256x128xi1>, vector<256x128xf32>
    %c0_12 = arith.constant 0 : index
    %c0_13 = arith.constant 0 : index
    %18 = vector.load %arg5[%c0_12, %c0_13] : memref<128x256xbf16, #tpu.memory_space<vmem>>, vector<128x256xbf16>
    %19 = arith.truncf %17 : vector<256x128xf32> to vector<256x128xbf16>
    %cst_14 = arith.constant dense<0.000000e+00> : vector<128x128xf32>
    %20 = tpu.matmul %18, %19, %cst_14 {dimension_numbers = #tpu.dot_dimension_numbers<[1], [0], [0], [1], [0, 0, 1, 1], [], []>} : vector<128x256xbf16>, vector<256x128xbf16>, vector<128x128xf32> -> vector<128x128xf32>
    %c0_15 = arith.constant 0 : index
    %c0_16 = arith.constant 0 : index
    %21 = vector.load %arg6[%c0_15, %c0_16] : memref<128x128xf32, #tpu.memory_space<vmem>>, vector<128x128xf32>
    %22 = arith.addf %20, %21 : vector<128x128xf32>
    %cst_17 = arith.constant 0.000000e+00 : f32
    %23 = vector.broadcast %cst_17 : f32 to vector<128x128xf32>
    %24 = arith.cmpf ogt, %22, %23 : vector<128x128xf32>
    %cst_18 = arith.constant 0.00999999977 : f32
    %25 = vector.broadcast %cst_18 : f32 to vector<128x128xf32>
    %26 = arith.mulf %25, %22 : vector<128x128xf32>
    %27 = arith.select %24, %22, %26 : vector<128x128xi1>, vector<128x128xf32>
    %c0_19 = arith.constant 0 : index
    %c0_20 = arith.constant 0 : index
    %28 = vector.load %arg7[%c0_19, %c0_20] : memref<128x128xf32, #tpu.memory_space<vmem>>, vector<128x128xf32>
    %29 = arith.mulf %27, %28 : vector<128x128xf32>
    %cst_21 = arith.constant dense<0.000000e+00> : vector<128xf32>
    %30 = vector.multi_reduction <add>, %29, %cst_21 [0] : vector<128x128xf32> to vector<128xf32>
    %31 = vector.shape_cast %30 : vector<128xf32> to vector<1x128xf32>
    %c0_22 = arith.constant 0 : index
    %c0_23 = arith.constant 0 : index
    %32 = vector.load %arg8[%c0_22, %c0_23] : memref<1x128xf32, #tpu.memory_space<vmem>>, vector<1x128xf32>
    %33 = arith.addf %31, %32 : vector<1x128xf32>
    %c0_24 = arith.constant 0 : index
    %c0_25 = arith.constant 0 : index
    %34 = vector.load %arg9[%c0_24, %c0_25] : memref<1x128xf32, #tpu.memory_space<vmem>>, vector<1x128xf32>
    tpu.vector_store %arg9[%c0_24, %c0_25], %33 {strides = array<i32>} : memref<1x128xf32, #tpu.memory_space<vmem>>, vector<1x128xf32>,
    return
  }
  func.func @transform_0(%arg0: i32) -> (i32, i32) {
    %c0_i32 = arith.constant 0 : i32
    %c0_i32_0 = arith.constant 0 : i32
    return %c0_i32, %arg0 : i32, i32
  }
  func.func @transform_1(%arg0: i32) -> (i32, i32) {
    %c0_i32 = arith.constant 0 : i32
    %c0_i32_0 = arith.constant 0 : i32
    %c0_i32_1 = arith.constant 0 : i32
    return %c0_i32, %c0_i32_0 : i32, i32
  }
  func.func @transform_2(%arg0: i32) -> (i32, i32) {
    %c0_i32 = arith.constant 0 : i32
    %c0_i32_0 = arith.constant 0 : i32
    %c0_i32_1 = arith.constant 0 : i32
    return %c0_i32, %c0_i32_0 : i32, i32
  }
  func.func @transform_3(%arg0: i32) -> (i32, i32) {
    %c0_i32 = arith.constant 0 : i32
    %c0_i32_0 = arith.constant 0 : i32
    %c0_i32_1 = arith.constant 0 : i32
    return %c0_i32, %c0_i32_0 : i32, i32
  }
  func.func @transform_4(%arg0: i32) -> (i32, i32) {
    %c0_i32 = arith.constant 0 : i32
    %c0_i32_0 = arith.constant 0 : i32
    %c0_i32_1 = arith.constant 0 : i32
    return %c0_i32, %c0_i32_0 : i32, i32
  }
  func.func @transform_5(%arg0: i32) -> (i32, i32) {
    %c0_i32 = arith.constant 0 : i32
    %c0_i32_0 = arith.constant 0 : i32
    %c0_i32_1 = arith.constant 0 : i32
    return %c0_i32, %c0_i32_0 : i32, i32
  }
  func.func @transform_6(%arg0: i32) -> (i32, i32) {
    %c0_i32 = arith.constant 0 : i32
    %c0_i32_0 = arith.constant 0 : i32
    %c0_i32_1 = arith.constant 0 : i32
    return %c0_i32, %c0_i32_0 : i32, i32
  }
  func.func @transform_7(%arg0: i32) -> (i32, i32) {
    %c0_i32 = arith.constant 0 : i32
    %c0_i32_0 = arith.constant 0 : i32
    %c0_i32_1 = arith.constant 0 : i32
    return %c0_i32, %c0_i32_0 : i32, i32
  }
  func.func @transform_8(%arg0: i32) -> (i32, i32) {
    %c0_i32 = arith.constant 0 : i32
    %c0_i32_0 = arith.constant 0 : i32
    return %c0_i32, %arg0 : i32, i32
  }
}

</mosaic_0001>

<llo_original>
// kernel: tpu_custom_call.1
$region0: #{tpu_custom_call.1}
  #allocation0 [shape = 'u32[]', space=smem, size = 0x4, offset = 0x4, fixed_abs, tag = 'smem constant byte address 0x4 - core index']
  #allocation1 [shape = 'u32[72,128]{1,0:T(1,128)}', space=vmem, size = 0x9000, scoped, tag = 'internal scratch']
  %s0 = inlined_call_operand.hbm [shape: bf16[768,128], index: 0, kind: input, shape index: {}]
  %s1 = inlined_call_operand.hbm [shape: bf16[128,768], index: 1, kind: input, shape index: {}]
  %s2 = inlined_call_operand.hbm [shape: bf16[256,128], index: 2, kind: input, shape index: {}]
  %s3 = inlined_call_operand.hbm [shape: f32[256,128], index: 3, kind: input, shape index: {}]
  %s4 = inlined_call_operand.hbm [shape: bf16[128,256], index: 4, kind: input, shape index: {}]
  %s5 = inlined_call_operand.hbm [shape: f32[128,128], index: 5, kind: input, shape index: {}]
  %s6 = inlined_call_operand.hbm [shape: f32[128,128], index: 6, kind: input, shape index: {}]
  %s7 = inlined_call_operand.vmem [shape: f32[1,128], index: 7, kind: input, shape index: {}]
  %s8 = inlined_call_operand.hbm [shape: f32[1,128], index: 8, kind: output, shape index: {}]
  %s9 = sld [smem:[#allocation0]]
  $region70: #{tpu_custom_call.1} parent=0
    _
  %s11 = ssub.s32 1, %s9
  %s12 = scalar_select 0, %s11, %s9
  $region1: #{tpu_custom_call.1} parent=0
    #allocation2 [shape = 'u8[196608]{0}', space=vmem, size = 0x30000, scoped, tag = 'input window, operand 0, single buffered']
    #allocation3 [shape = 's32[1]{0}', space=sflag, size = 0x4, scoped, tag = 'scoped memory for tpu_custom_call.1']
    #allocation4 [shape = 's32[1]{0}', space=sflag, size = 0x4, scoped, tag = 'scoped memory for tpu_custom_call.1']
    #allocation5 [shape = 'u8[196608]{0}', space=vmem, size = 0x30000, scoped, tag = 'input window, operand 1, single buffered']
    #allocation6 [shape = 's32[1]{0}', space=sflag, size = 0x4, scoped, tag = 'scoped memory for tpu_custom_call.1']
    #allocation7 [shape = 'u8[65536]{0}', space=vmem, size = 0x10000, scoped, tag = 'input window, operand 2, single buffered']
    #allocation8 [shape = 'u8[131072]{0}', space=vmem, size = 0x20000, scoped, tag = 'input window, operand 3, single buffered']
    #allocation9 [shape = 's32[1]{0}', space=sflag, size = 0x4, scoped, tag = 'scoped memory for tpu_custom_call.1']
    #allocation10 [shape = 'u8[65536]{0}', space=vmem, size = 0x10000, scoped, tag = 'input window, operand 4, single buffered']
    #allocation11 [shape = 'u8[65536]{0}', space=vmem, size = 0x10000, scoped, tag = 'input window, operand 5, single buffered']
    #allocation12 [shape = 's32[1]{0}', space=sflag, size = 0x4, scoped, tag = 'scoped memory for tpu_custom_call.1']
    #allocation13 [shape = 'u8[65536]{0}', space=vmem, size = 0x10000, scoped, tag = 'input window, operand 6, single buffered']
    #allocation14 [shape = 'u8[512]{0}', space=vmem, size = 0x400, scoped, tag = 'output window, operand 0, single buffered']
    %13 = vsyncpa [#allocation3], 0
    %14 = vsyncpa [#allocation6], 0
    %15 = vsyncpa [#allocation9], 0
    %16 = vsyncpa [#allocation12], 0
    %17 = vsyncpa [#allocation4], 0
    // Predicated region
    $region2: #{tpu_custom_call.1} parent=1 // pred_check
      _
    $region3: #{tpu_custom_call.1} parent=1 // pred_check_branch
      %19 = sbr.rel (0) target = $region5
    $region4: #{tpu_custom_call.1} parent=1 // pred_region
      %21 = vsyncadd [#allocation3], 0
      %s22 = sshll.u32 %s0, 4
      %s23 = int_to_ptr.hbm [resolvable:$true] %s22
      %s24 = sshll.u32 [#allocation2], 4
      %s25 = int_to_ptr.vmem [resolvable:$true] %s24
      %30 = dma.hbm_to_vmem [thread:$0]  %s23, 6144, %s25, [#allocation3], 64, 64, 4
    $region5: #{tpu_custom_call.1} parent=1 // pred_fallthru
      _
    // Predicated region
    $region6: #{tpu_custom_call.1} parent=1 // pred_check
      _
    $region7: #{tpu_custom_call.1} parent=1 // pred_check_branch
      %32 = sbr.rel (0) target = $region9
    $region8: #{tpu_custom_call.1} parent=1 // pred_region
      %34 = vsyncadd [#allocation6], 0
      %s35 = sshll.u32 %s1, 4
      %s36 = int_to_ptr.hbm [resolvable:$true] %s35
      %s37 = sshll.u32 [#allocation5], 4
      %s38 = int_to_ptr.vmem [resolvable:$true] %s37
      %43 = dma.hbm_to_vmem [thread:$0]  %s36, 6144, %s38, [#allocation6], 384, 384, 24
    $region9: #{tpu_custom_call.1} parent=1 // pred_fallthru
      _
    // Predicated region
    $region10: #{tpu_custom_call.1} parent=1 // pred_check
      _
    $region11: #{tpu_custom_call.1} parent=1 // pred_check_branch
      %45 = sbr.rel (0) target = $region13
    $region12: #{tpu_custom_call.1} parent=1 // pred_region
      %47 = vsyncadd [#allocation6], 0
      %s48 = sshll.u32 %s2, 4
      %s49 = int_to_ptr.hbm [resolvable:$true] %s48
      %s50 = sshll.u32 [#allocation7], 4
      %s51 = int_to_ptr.vmem [resolvable:$true] %s50
      %56 = dma.hbm_to_vmem [thread:$0]  %s49, 2048, %s51, [#allocation6], 64, 64, 4
    $region13: #{tpu_custom_call.1} parent=1 // pred_fallthru
      _
    // Predicated region
    $region14: #{tpu_custom_call.1} parent=1 // pred_check
      _
    $region15: #{tpu_custom_call.1} parent=1 // pred_check_branch
      %58 = sbr.rel (0) target = $region17
    $region16: #{tpu_custom_call.1} parent=1 // pred_region
      %60 = vsyncadd [#allocation9], 0
      %s61 = sshll.u32 %s3, 4
      %s62 = int_to_ptr.hbm [resolvable:$true] %s61
      %s63 = sshll.u32 [#allocation8], 4
      %s64 = int_to_ptr.vmem [resolvable:$true] %s63
      %69 = dma.hbm_to_vmem [thread:$0]  %s62, 4096, %s64, [#allocation9], 128, 128, 8
    $region17: #{tpu_custom_call.1} parent=1 // pred_fallthru
      _
    // Predicated region
    $region18: #{tpu_custom_call.1} parent=1 // pred_check
      _
    $region19: #{tpu_custom_call.1} parent=1 // pred_check_branch
      %71 = sbr.rel (0) target = $region21
    $region20: #{tpu_custom_call.1} parent=1 // pred_region
      %73 = vsyncadd [#allocation9], 0
      %s74 = sshll.u32 %s4, 4
      %s75 = int_to_ptr.hbm [resolvable:$true] %s74
      %s76 = sshll.u32 [#allocation10], 4
      %s77 = int_to_ptr.vmem [resolvable:$true] %s76
      %82 = dma.hbm_to_vmem [thread:$0]  %s75, 2048, %s77, [#allocation9], 128, 128, 8
    $region21: #{tpu_custom_call.1} parent=1 // pred_fallthru
      _
    // Predicated region
    $region22: #{tpu_custom_call.1} parent=1 // pred_check
      _
    $region23: #{tpu_custom_call.1} parent=1 // pred_check_branch
      %84 = sbr.rel (0) target = $region25
    $region24: #{tpu_custom_call.1} parent=1 // pred_region
      %86 = vsyncadd [#allocation12], 0
      %s87 = sshll.u32 %s5, 4
      %s88 = int_to_ptr.hbm [resolvable:$true] %s87
      %s89 = sshll.u32 [#allocation11], 4
      %s90 = int_to_ptr.vmem [resolvable:$true] %s89
      %95 = dma.hbm_to_vmem [thread:$0]  %s88, 2048, %s90, [#allocation12], 128, 128, 8
    $region25: #{tpu_custom_call.1} parent=1 // pred_fallthru
      _
    // Predicated region
    $region26: #{tpu_custom_call.1} parent=1 // pred_check
      _
    $region27: #{tpu_custom_call.1} parent=1 // pred_check_branch
      %97 = sbr.rel (0) target = $region29
    $region28: #{tpu_custom_call.1} parent=1 // pred_region
      %99 = vsyncadd [#allocation12], 0
      %s100 = sshll.u32 %s6, 4
      %s101 = int_to_ptr.hbm [resolvable:$true] %s100
      %s102 = sshll.u32 [#allocation13], 4
      %s103 = int_to_ptr.vmem [resolvable:$true] %s102
      %108 = dma.hbm_to_vmem [thread:$0]  %s101, 2048, %s103, [#allocation12], 128, 128, 8
    $region29: #{tpu_custom_call.1} parent=1 // pred_fallthru
      _
    // Predicated region
    $region30: #{tpu_custom_call.1} parent=1 // pred_check
      _
    $region31: #{tpu_custom_call.1} parent=1 // pred_check_branch
      %110 = sbr.rel (0) target = $region33
    $region32: #{tpu_custom_call.1} parent=1 // pred_region
      _
    $region33: #{tpu_custom_call.1} parent=1 // pred_fallthru
      _
    // Predicated region
    $region34: #{tpu_custom_call.1} parent=1 // pred_check
      _
    $region35: #{tpu_custom_call.1} parent=1 // pred_check_branch
      %112 = sbr.rel (0) target = $region37
    $region36: #{tpu_custom_call.1} parent=1 // pred_region
      %114 = dma.done [#allocation3], 6144
    $region37: #{tpu_custom_call.1} parent=1 // pred_fallthru
      _
    // Predicated region
    $region38: #{tpu_custom_call.1} parent=1 // pred_check
      _
    $region39: #{tpu_custom_call.1} parent=1 // pred_check_branch
      %116 = sbr.rel (0) target = $region41
    $region40: #{tpu_custom_call.1} parent=1 // pred_region
      %118 = dma.done [#allocation6], 6144
    $region41: #{tpu_custom_call.1} parent=1 // pred_fallthru
      _
    // Predicated region
    $region42: #{tpu_custom_call.1} parent=1 // pred_check
      _
    $region43: #{tpu_custom_call.1} parent=1 // pred_check_branch
      %120 = sbr.rel (0) target = $region45
    $region44: #{tpu_custom_call.1} parent=1 // pred_region
      %122 = dma.done [#allocation6], 2048
    $region45: #{tpu_custom_call.1} parent=1 // pred_fallthru
      _
    // Predicated region
    $region46: #{tpu_custom_call.1} parent=1 // pred_check
      _
    $region47: #{tpu_custom_call.1} parent=1 // pred_check_branch
      %124 = sbr.rel (0) target = $region49
    $region48: #{tpu_custom_call.1} parent=1 // pred_region
      %126 = dma.done [#allocation9], 4096
    $region49: #{tpu_custom_call.1} parent=1 // pred_fallthru
      _
    // Predicated region
    $region50: #{tpu_custom_call.1} parent=1 // pred_check
      _
    $region51: #{tpu_custom_call.1} parent=1 // pred_check_branch
      %128 = sbr.rel (0) target = $region53
    $region52: #{tpu_custom_call.1} parent=1 // pred_region
      %130 = dma.done [#allocation9], 2048
    $region53: #{tpu_custom_call.1} parent=1 // pred_fallthru
      _
    // Predicated region
    $region54: #{tpu_custom_call.1} parent=1 // pred_check
      _
    $region55: #{tpu_custom_call.1} parent=1 // pred_check_branch
      %132 = sbr.rel (0) target = $region57
    $region56: #{tpu_custom_call.1} parent=1 // pred_region
      %134 = dma.done [#allocation12], 2048
    $region57: #{tpu_custom_call.1} parent=1 // pred_fallthru
      _
    // Predicated region
    $region58: #{tpu_custom_call.1} parent=1 // pred_check
      _
    $region59: #{tpu_custom_call.1} parent=1 // pred_check_branch
      %136 = sbr.rel (0) target = $region61
    $region60: #{tpu_custom_call.1} parent=1 // pred_region
      %138 = dma.done [#allocation12], 2048
    $region61: #{tpu_custom_call.1} parent=1 // pred_fallthru
      _
    %v139 = vld [vmem:[#allocation2] sm:$0xf]
    %v140 = vld [vmem:[#allocation2 + $0x4] sm:$0xf]
    %v141 = vld [vmem:[#allocation2 + $0x8] sm:$0xf]
    %v142 = vld [vmem:[#allocation2 + $0xc] sm:$0xf]
    %v143 = vld [vmem:[#allocation2 + $0x10] sm:$0xf]
    %v144 = vld [vmem:[#allocation2 + $0x14] sm:$0xf]
    %v145 = vld [vmem:[#allocation2 + $0x18] sm:$0xf]
    %v146 = vld [vmem:[#allocation2 + $0x1c] sm:$0xf]
    %v147 = vld [vmem:[#allocation2 + $0x20] sm:$0xf]
    %v148 = vld [vmem:[#allocation2 + $0x24] sm:$0xf]
    %v149 = vld [vmem:[#allocation2 + $0x28] sm:$0xf]
    %v150 = vld [vmem:[#allocation2 + $0x2c] sm:$0xf]
    %v151 = vld [vmem:[#allocation2 + $0x30] sm:$0xf]
    %v152 = vld [vmem:[#allocation2 + $0x34] sm:$0xf]
    %v153 = vld [vmem:[#allocation2 + $0x38] sm:$0xf]
    %v154 = vld [vmem:[#allocation2 + $0x3c] sm:$0xf]
    %v155 = vld [vmem:[#allocation2 + $0x40] sm:$0xf]
    %v156 = vld [vmem:[#allocation2 + $0x44] sm:$0xf]
    %v157 = vld [vmem:[#allocation2 + $0x48] sm:$0xf]
    %v158 = vld [vmem:[#allocation2 + $0x4c] sm:$0xf]
    %v159 = vld [vmem:[#allocation2 + $0x50] sm:$0xf]
    %v160 = vld [vmem:[#allocation2 + $0x54] sm:$0xf]
    %v161 = vld [vmem:[#allocation2 + $0x58] sm:$0xf]
    %v162 = vld [vmem:[#allocation2 + $0x5c] sm:$0xf]
    %v163 = vld [vmem:[#allocation2 + $0x60] sm:$0xf]
    %v164 = vld [vmem:[#allocation2 + $0x64] sm:$0xf]
    %v165 = vld [vmem:[#allocation2 + $0x68] sm:$0xf]
    %v166 = vld [vmem:[#allocation2 + $0x6c] sm:$0xf]
    %v167 = vld [vmem:[#allocation2 + $0x70] sm:$0xf]
    %v168 = vld [vmem:[#allocation2 + $0x74] sm:$0xf]
    %v169 = vld [vmem:[#allocation2 + $0x78] sm:$0xf]
    %v170 = vld [vmem:[#allocation2 + $0x7c] sm:$0xf]
    %v171 = vld [vmem:[#allocation2 + $0x80] sm:$0xf]
    %v172 = vld [vmem:[#allocation2 + $0x84] sm:$0xf]
    %v173 = vld [vmem:[#allocation2 + $0x88] sm:$0xf]
    %v174 = vld [vmem:[#allocation2 + $0x8c] sm:$0xf]
    %v175 = vld [vmem:[#allocation2 + $0x90] sm:$0xf]
    %v176 = vld [vmem:[#allocation2 + $0x94] sm:$0xf]
    %v177 = vld [vmem:[#allocation2 + $0x98] sm:$0xf]
    %v178 = vld [vmem:[#allocation2 + $0x9c] sm:$0xf]
    %v179 = vld [vmem:[#allocation2 + $0xa0] sm:$0xf]
    %v180 = vld [vmem:[#allocation2 + $0xa4] sm:$0xf]
    %v181 = vld [vmem:[#allocation2 + $0xa8] sm:$0xf]
    %v182 = vld [vmem:[#allocation2 + $0xac] sm:$0xf]
    %v183 = vld [vmem:[#allocation2 + $0xb0] sm:$0xf]
    %v184 = vld [vmem:[#allocation2 + $0xb4] sm:$0xf]
    %v185 = vld [vmem:[#allocation2 + $0xb8] sm:$0xf]
    %v186 = vld [vmem:[#allocation2 + $0xbc] sm:$0xf]
    %v187 = vld [vmem:[#allocation2 + $0xc0] sm:$0xf]
    %v188 = vld [vmem:[#allocation2 + $0xc4] sm:$0xf]
    %v189 = vld [vmem:[#allocation2 + $0xc8] sm:$0xf]
    %v190 = vld [vmem:[#allocation2 + $0xcc] sm:$0xf]
    %v191 = vld [vmem:[#allocation2 + $0xd0] sm:$0xf]
    %v192 = vld [vmem:[#allocation2 + $0xd4] sm:$0xf]
    %v193 = vld [vmem:[#allocation2 + $0xd8] sm:$0xf]
    %v194 = vld [vmem:[#allocation2 + $0xdc] sm:$0xf]
    %v195 = vld [vmem:[#allocation2 + $0xe0] sm:$0xf]
    %v196 = vld [vmem:[#allocation2 + $0xe4] sm:$0xf]
    %v197 = vld [vmem:[#allocation2 + $0xe8] sm:$0xf]
    %v198 = vld [vmem:[#allocation2 + $0xec] sm:$0xf]
    %v199 = vld [vmem:[#allocation2 + $0xf0] sm:$0xf]
    %v200 = vld [vmem:[#allocation2 + $0xf4] sm:$0xf]
    %v201 = vld [vmem:[#allocation2 + $0xf8] sm:$0xf]
    %v202 = vld [vmem:[#allocation2 + $0xfc] sm:$0xf]
    %v203 = vld [vmem:[#allocation2 + $0x100] sm:$0xf]
    %v204 = vld [vmem:[#allocation2 + $0x104] sm:$0xf]
    %v205 = vld [vmem:[#allocation2 + $0x108] sm:$0xf]
    %v206 = vld [vmem:[#allocation2 + $0x10c] sm:$0xf]
    %v207 = vld [vmem:[#allocation2 + $0x110] sm:$0xf]
    %v208 = vld [vmem:[#allocation2 + $0x114] sm:$0xf]
    %v209 = vld [vmem:[#allocation2 + $0x118] sm:$0xf]
    %v210 = vld [vmem:[#allocation2 + $0x11c] sm:$0xf]
    %v211 = vld [vmem:[#allocation2 + $0x120] sm:$0xf]
    %v212 = vld [vmem:[#allocation2 + $0x124] sm:$0xf]
    %v213 = vld [vmem:[#allocation2 + $0x128] sm:$0xf]
    %v214 = vld [vmem:[#allocation2 + $0x12c] sm:$0xf]
    %v215 = vld [vmem:[#allocation2 + $0x130] sm:$0xf]
    %v216 = vld [vmem:[#allocation2 + $0x134] sm:$0xf]
    %v217 = vld [vmem:[#allocation2 + $0x138] sm:$0xf]
    %v218 = vld [vmem:[#allocation2 + $0x13c] sm:$0xf]
    %v219 = vld [vmem:[#allocation2 + $0x140] sm:$0xf]
    %v220 = vld [vmem:[#allocation2 + $0x144] sm:$0xf]
    %v221 = vld [vmem:[#allocation2 + $0x148] sm:$0xf]
    %v222 = vld [vmem:[#allocation2 + $0x14c] sm:$0xf]
    %v223 = vld [vmem:[#allocation2 + $0x150] sm:$0xf]
    %v224 = vld [vmem:[#allocation2 + $0x154] sm:$0xf]
    %v225 = vld [vmem:[#allocation2 + $0x158] sm:$0xf]
    %v226 = vld [vmem:[#allocation2 + $0x15c] sm:$0xf]
    %v227 = vld [vmem:[#allocation2 + $0x160] sm:$0xf]
    %v228 = vld [vmem:[#allocation2 + $0x164] sm:$0xf]
    %v229 = vld [vmem:[#allocation2 + $0x168] sm:$0xf]
    %v230 = vld [vmem:[#allocation2 + $0x16c] sm:$0xf]
    %v231 = vld [vmem:[#allocation2 + $0x170] sm:$0xf]
    %v232 = vld [vmem:[#allocation2 + $0x174] sm:$0xf]
    %v233 = vld [vmem:[#allocation2 + $0x178] sm:$0xf]
    %v234 = vld [vmem:[#allocation2 + $0x17c] sm:$0xf]
    %v235 = vld [vmem:[#allocation5] sm:$0xff]
    %v236 = vld [vmem:[#allocation5 + $0x8] sm:$0xff]
    %v237 = vld [vmem:[#allocation5 + $0x10] sm:$0xff]
    %v238 = vld [vmem:[#allocation5 + $0x18] sm:$0xff]
    %v239 = vld [vmem:[#allocation5 + $0x20] sm:$0xff]
    %v240 = vld [vmem:[#allocation5 + $0x28] sm:$0xff]
    %v241 = vld [vmem:[#allocation5 + $0x30] sm:$0xff]
    %v242 = vld [vmem:[#allocation5 + $0x38] sm:$0xff]
    %v243 = vld [vmem:[#allocation5 + $0x40] sm:$0xff]
    %v244 = vld [vmem:[#allocation5 + $0x48] sm:$0xff]
    %v245 = vld [vmem:[#allocation5 + $0x50] sm:$0xff]
    %v246 = vld [vmem:[#allocation5 + $0x58] sm:$0xff]
    %v247 = vld [vmem:[#allocation5 + $0x60] sm:$0xff]
    %v248 = vld [vmem:[#allocation5 + $0x68] sm:$0xff]
    %v249 = vld [vmem:[#allocation5 + $0x70] sm:$0xff]
    %v250 = vld [vmem:[#allocation5 + $0x78] sm:$0xff]
    %v251 = vld [vmem:[#allocation5 + $0x80] sm:$0xff]
    %v252 = vld [vmem:[#allocation5 + $0x88] sm:$0xff]
    %v253 = vld [vmem:[#allocation5 + $0x90] sm:$0xff]
    %v254 = vld [vmem:[#allocation5 + $0x98] sm:$0xff]
    %v255 = vld [vmem:[#allocation5 + $0xa0] sm:$0xff]
    %v256 = vld [vmem:[#allocation5 + $0xa8] sm:$0xff]
    %v257 = vld [vmem:[#allocation5 + $0xb0] sm:$0xff]
    %v258 = vld [vmem:[#allocation5 + $0xb8] sm:$0xff]
    %v259 = vld [vmem:[#allocation5 + $0xc0] sm:$0xff]
    %v260 = vld [vmem:[#allocation5 + $0xc8] sm:$0xff]
    %v261 = vld [vmem:[#allocation5 + $0xd0] sm:$0xff]
    %v262 = vld [vmem:[#allocation5 + $0xd8] sm:$0xff]
    %v263 = vld [vmem:[#allocation5 + $0xe0] sm:$0xff]
    %v264 = vld [vmem:[#allocation5 + $0xe8] sm:$0xff]
    %v265 = vld [vmem:[#allocation5 + $0xf0] sm:$0xff]
    %v266 = vld [vmem:[#allocation5 + $0xf8] sm:$0xff]
    %v267 = vld [vmem:[#allocation5 + $0x100] sm:$0xff]
    %v268 = vld [vmem:[#allocation5 + $0x108] sm:$0xff]
    %v269 = vld [vmem:[#allocation5 + $0x110] sm:$0xff]
    %v270 = vld [vmem:[#allocation5 + $0x118] sm:$0xff]
    %v271 = vld [vmem:[#allocation5 + $0x120] sm:$0xff]
    %v272 = vld [vmem:[#allocation5 + $0x128] sm:$0xff]
    %v273 = vld [vmem:[#allocation5 + $0x130] sm:$0xff]
    %v274 = vld [vmem:[#allocation5 + $0x138] sm:$0xff]
    %v275 = vld [vmem:[#allocation5 + $0x140] sm:$0xff]
    %v276 = vld [vmem:[#allocation5 + $0x148] sm:$0xff]
    %v277 = vld [vmem:[#allocation5 + $0x150] sm:$0xff]
    %v278 = vld [vmem:[#allocation5 + $0x158] sm:$0xff]
    %v279 = vld [vmem:[#allocation5 + $0x160] sm:$0xff]
    %v280 = vld [vmem:[#allocation5 + $0x168] sm:$0xff]
    %v281 = vld [vmem:[#allocation5 + $0x170] sm:$0xff]
    %v282 = vld [vmem:[#allocation5 + $0x178] sm:$0xff]
    %v331 = vunpack.c.l.b16 %v235
    %v332 = vunpack.c.h.b16 %v235
    %v333 = vunpack.c.l.b16 %v236
    %v334 = vunpack.c.h.b16 %v236
    %v335 = vunpack.c.l.b16 %v237
    %v336 = vunpack.c.h.b16 %v237
    %v337 = vunpack.c.l.b16 %v238
    %v338 = vunpack.c.h.b16 %v238
    %v339 = vunpack.c.l.b16 %v239
    %v340 = vunpack.c.h.b16 %v239
    %v341 = vunpack.c.l.b16 %v240
    %v342 = vunpack.c.h.b16 %v240
    %v343 = vunpack.c.l.b16 %v241
    %v344 = vunpack.c.h.b16 %v241
    %v345 = vunpack.c.l.b16 %v242
    %v346 = vunpack.c.h.b16 %v242
    %v347 = vunpack.c.l.b16 %v243
    %v348 = vunpack.c.h.b16 %v243
    %v349 = vunpack.c.l.b16 %v244
    %v350 = vunpack.c.h.b16 %v244
    %v351 = vunpack.c.l.b16 %v245
    %v352 = vunpack.c.h.b16 %v245
    %v353 = vunpack.c.l.b16 %v246
    %v354 = vunpack.c.h.b16 %v246
    %v355 = vunpack.c.l.b16 %v247
    %v356 = vunpack.c.h.b16 %v247
    %v357 = vunpack.c.l.b16 %v248
    %v358 = vunpack.c.h.b16 %v248
    %v359 = vunpack.c.l.b16 %v249
    %v360 = vunpack.c.h.b16 %v249
    %v361 = vunpack.c.l.b16 %v250
    %v362 = vunpack.c.h.b16 %v250
    %v363 = vunpack.c.l.b16 %v251
    %v364 = vunpack.c.h.b16 %v251
    %v365 = vunpack.c.l.b16 %v252
    %v366 = vunpack.c.h.b16 %v252
    %v367 = vunpack.c.l.b16 %v253
    %v368 = vunpack.c.h.b16 %v253
    %v369 = vunpack.c.l.b16 %v254
    %v370 = vunpack.c.h.b16 %v254
    %v371 = vunpack.c.l.b16 %v255
    %v372 = vunpack.c.h.b16 %v255
    %v373 = vunpack.c.l.b16 %v256
    %v374 = vunpack.c.h.b16 %v256
    %v375 = vunpack.c.l.b16 %v257
    %v376 = vunpack.c.h.b16 %v257
    %v377 = vunpack.c.l.b16 %v258
    %v378 = vunpack.c.h.b16 %v258
    %v379 = vunpack.c.l.b16 %v259
    %v380 = vunpack.c.h.b16 %v259
    %v381 = vunpack.c.l.b16 %v260
    %v382 = vunpack.c.h.b16 %v260
    %v383 = vunpack.c.l.b16 %v261
    %v384 = vunpack.c.h.b16 %v261
    %v385 = vunpack.c.l.b16 %v262
    %v386 = vunpack.c.h.b16 %v262
    %v387 = vunpack.c.l.b16 %v263
    %v388 = vunpack.c.h.b16 %v263
    %v389 = vunpack.c.l.b16 %v264
    %v390 = vunpack.c.h.b16 %v264
    %v391 = vunpack.c.l.b16 %v265
    %v392 = vunpack.c.h.b16 %v265
    %v393 = vunpack.c.l.b16 %v266
    %v394 = vunpack.c.h.b16 %v266
    %v395 = vunpack.c.l.b16 %v267
    %v396 = vunpack.c.h.b16 %v267
    %v397 = vunpack.c.l.b16 %v268
    %v398 = vunpack.c.h.b16 %v268
    %v399 = vunpack.c.l.b16 %v269
    %v400 = vunpack.c.h.b16 %v269
    %v401 = vunpack.c.l.b16 %v270
    %v402 = vunpack.c.h.b16 %v270
    %v403 = vunpack.c.l.b16 %v271
    %v404 = vunpack.c.h.b16 %v271
    %v405 = vunpack.c.l.b16 %v272
    %v406 = vunpack.c.h.b16 %v272
    %v407 = vunpack.c.l.b16 %v273
    %v408 = vunpack.c.h.b16 %v273
    %v409 = vunpack.c.l.b16 %v274
    %v410 = vunpack.c.h.b16 %v274
    %v411 = vunpack.c.l.b16 %v275
    %v412 = vunpack.c.h.b16 %v275
    %v413 = vunpack.c.l.b16 %v276
    %v414 = vunpack.c.h.b16 %v276
    %v415 = vunpack.c.l.b16 %v277
    %v416 = vunpack.c.h.b16 %v277
    %v417 = vunpack.c.l.b16 %v278
    %v418 = vunpack.c.h.b16 %v278
    %v419 = vunpack.c.l.b16 %v279
    %v420 = vunpack.c.h.b16 %v279
    %v421 = vunpack.c.l.b16 %v280
    %v422 = vunpack.c.h.b16 %v280
    %v423 = vunpack.c.l.b16 %v281
    %v424 = vunpack.c.h.b16 %v281
    %v425 = vunpack.c.l.b16 %v282
    %v426 = vunpack.c.h.b16 %v282
    %v427 = vpack.c.b16 %v337, %v331
    %v428 = vpack.c.b16 %v338, %v332
    %v429 = vpack.c.b16 %v339, %v333
    %v430 = vpack.c.b16 %v340, %v334
    %v431 = vpack.c.b16 %v341, %v335
    %v432 = vpack.c.b16 %v342, %v336
    %v433 = vpack.c.b16 %v349, %v343
    %v434 = vpack.c.b16 %v350, %v344
    %v435 = vpack.c.b16 %v351, %v345
    %v436 = vpack.c.b16 %v352, %v346
    %v437 = vpack.c.b16 %v353, %v347
    %v438 = vpack.c.b16 %v354, %v348
    %v439 = vpack.c.b16 %v361, %v355
    %v440 = vpack.c.b16 %v362, %v356
    %v441 = vpack.c.b16 %v363, %v357
    %v442 = vpack.c.b16 %v364, %v358
    %v443 = vpack.c.b16 %v365, %v359
    %v444 = vpack.c.b16 %v366, %v360
    %v445 = vpack.c.b16 %v373, %v367
    %v446 = vpack.c.b16 %v374, %v368
    %v447 = vpack.c.b16 %v375, %v369
    %v448 = vpack.c.b16 %v376, %v370
    %v449 = vpack.c.b16 %v377, %v371
    %v450 = vpack.c.b16 %v378, %v372
    %v451 = vpack.c.b16 %v385, %v379
    %v452 = vpack.c.b16 %v386, %v380
    %v453 = vpack.c.b16 %v387, %v381
    %v454 = vpack.c.b16 %v388, %v382
    %v455 = vpack.c.b16 %v389, %v383
    %v456 = vpack.c.b16 %v390, %v384
    %v457 = vpack.c.b16 %v397, %v391
    %v458 = vpack.c.b16 %v398, %v392
    %v459 = vpack.c.b16 %v399, %v393
    %v460 = vpack.c.b16 %v400, %v394
    %v461 = vpack.c.b16 %v401, %v395
    %v462 = vpack.c.b16 %v402, %v396
    %v463 = vpack.c.b16 %v409, %v403
    %v464 = vpack.c.b16 %v410, %v404
    %v465 = vpack.c.b16 %v411, %v405
    %v466 = vpack.c.b16 %v412, %v406
    %v467 = vpack.c.b16 %v413, %v407
    %v468 = vpack.c.b16 %v414, %v408
    %v469 = vpack.c.b16 %v421, %v415
    %v470 = vpack.c.b16 %v422, %v416
    %v471 = vpack.c.b16 %v423, %v417
    %v472 = vpack.c.b16 %v424, %v418
    %v473 = vpack.c.b16 %v425, %v419
    %v474 = vpack.c.b16 %v426, %v420
    %v619 = vunpack.c.l.b16 %v139
    %v620 = vunpack.c.l.b16 %v140
    %v621 = vunpack.c.l.b16 %v141
    %v622 = vunpack.c.l.b16 %v142
    %v623 = vunpack.c.l.b16 %v143
    %v624 = vunpack.c.l.b16 %v144
    %v625 = vunpack.c.l.b16 %v145
    %v626 = vunpack.c.l.b16 %v146
    %v627 = vunpack.c.l.b16 %v147
    %v628 = vunpack.c.l.b16 %v148
    %v629 = vunpack.c.l.b16 %v149
    %v630 = vunpack.c.l.b16 %v150
    %v631 = vunpack.c.l.b16 %v151
    %v632 = vunpack.c.l.b16 %v152
    %v633 = vunpack.c.l.b16 %v153
    %v634 = vunpack.c.l.b16 %v154
    %v635 = vunpack.c.l.b16 %v155
    %v636 = vunpack.c.l.b16 %v156
    %v637 = vunpack.c.l.b16 %v157
    %v638 = vunpack.c.l.b16 %v158
    %v639 = vunpack.c.l.b16 %v159
    %v640 = vunpack.c.l.b16 %v160
    %v641 = vunpack.c.l.b16 %v161
    %v642 = vunpack.c.l.b16 %v162
    %v643 = vunpack.c.l.b16 %v163
    %v644 = vunpack.c.l.b16 %v164
    %v645 = vunpack.c.l.b16 %v165
    %v646 = vunpack.c.l.b16 %v166
    %v647 = vunpack.c.l.b16 %v167
    %v648 = vunpack.c.l.b16 %v168
    %v649 = vunpack.c.l.b16 %v169
    %v650 = vunpack.c.l.b16 %v170
    %v651 = vunpack.c.l.b16 %v171
    %v652 = vunpack.c.l.b16 %v172
    %v653 = vunpack.c.l.b16 %v173
    %v654 = vunpack.c.l.b16 %v174
    %v655 = vunpack.c.l.b16 %v175
    %v656 = vunpack.c.l.b16 %v176
    %v657 = vunpack.c.l.b16 %v177
    %v658 = vunpack.c.l.b16 %v178
    %v659 = vunpack.c.l.b16 %v179
    %v660 = vunpack.c.l.b16 %v180
    %v661 = vunpack.c.l.b16 %v181
    %v662 = vunpack.c.l.b16 %v182
    %v663 = vunpack.c.l.b16 %v183
    %v664 = vunpack.c.l.b16 %v184
    %v665 = vunpack.c.l.b16 %v185
    %v666 = vunpack.c.l.b16 %v186
    %v667 = vunpack.c.l.b16 %v187
    %v668 = vunpack.c.l.b16 %v188
    %v669 = vunpack.c.l.b16 %v189
    %v670 = vunpack.c.l.b16 %v190
    %v671 = vunpack.c.l.b16 %v191
    %v672 = vunpack.c.l.b16 %v192
    %v673 = vunpack.c.l.b16 %v193
    %v674 = vunpack.c.l.b16 %v194
    %v675 = vunpack.c.l.b16 %v195
    %v676 = vunpack.c.l.b16 %v196
    %v677 = vunpack.c.l.b16 %v197
    %v678 = vunpack.c.l.b16 %v198
    %v679 = vunpack.c.l.b16 %v199
    %v680 = vunpack.c.l.b16 %v200
    %v681 = vunpack.c.l.b16 %v201
    %v682 = vunpack.c.l.b16 %v202
    %v683 = vunpack.c.l.b16 %v203
    %v684 = vunpack.c.l.b16 %v204
    %v685 = vunpack.c.l.b16 %v205
    %v686 = vunpack.c.l.b16 %v206
    %v687 = vunpack.c.l.b16 %v207
    %v688 = vunpack.c.l.b16 %v208
    %v689 = vunpack.c.l.b16 %v209
    %v690 = vunpack.c.l.b16 %v210
    %v691 = vunpack.c.l.b16 %v211
    %v692 = vunpack.c.l.b16 %v212
    %v693 = vunpack.c.l.b16 %v213
    %v694 = vunpack.c.l.b16 %v214
    %v695 = vunpack.c.l.b16 %v215
    %v696 = vunpack.c.l.b16 %v216
    %v697 = vunpack.c.l.b16 %v217
    %v698 = vunpack.c.l.b16 %v218
    %v699 = vunpack.c.l.b16 %v219
    %v700 = vunpack.c.l.b16 %v220
    %v701 = vunpack.c.l.b16 %v221
    %v702 = vunpack.c.l.b16 %v222
    %v703 = vunpack.c.l.b16 %v223
    %v704 = vunpack.c.l.b16 %v224
    %v705 = vunpack.c.l.b16 %v225
    %v706 = vunpack.c.l.b16 %v226
    %v707 = vunpack.c.l.b16 %v227
    %v708 = vunpack.c.l.b16 %v228
    %v709 = vunpack.c.l.b16 %v229
    %v710 = vunpack.c.l.b16 %v230
    %v711 = vunpack.c.l.b16 %v231
    %v712 = vunpack.c.l.b16 %v232
    %v713 = vunpack.c.l.b16 %v233
    %v714 = vunpack.c.l.b16 %v234
    %v715 = vpack.c.b16 %v620, %v619
    %v716 = vpack.c.b16 %v622, %v621
    %v717 = vpack.c.b16 %v624, %v623
    %v718 = vpack.c.b16 %v626, %v625
    %v719 = vpack.c.b16 %v628, %v627
    %v720 = vpack.c.b16 %v630, %v629
    %v721 = vpack.c.b16 %v632, %v631
    %v722 = vpack.c.b16 %v634, %v633
    %v723 = vpack.c.b16 %v636, %v635
    %v724 = vpack.c.b16 %v638, %v637
    %v725 = vpack.c.b16 %v640, %v639
    %v726 = vpack.c.b16 %v642, %v641
    %v727 = vpack.c.b16 %v644, %v643
    %v728 = vpack.c.b16 %v646, %v645
    %v729 = vpack.c.b16 %v648, %v647
    %v730 = vpack.c.b16 %v650, %v649
    %v731 = vpack.c.b16 %v652, %v651
    %v732 = vpack.c.b16 %v654, %v653
    %v733 = vpack.c.b16 %v656, %v655
    %v734 = vpack.c.b16 %v658, %v657
    %v735 = vpack.c.b16 %v660, %v659
    %v736 = vpack.c.b16 %v662, %v661
    %v737 = vpack.c.b16 %v664, %v663
    %v738 = vpack.c.b16 %v666, %v665
    %v739 = vpack.c.b16 %v668, %v667
    %v740 = vpack.c.b16 %v670, %v669
    %v741 = vpack.c.b16 %v672, %v671
    %v742 = vpack.c.b16 %v674, %v673
    %v743 = vpack.c.b16 %v676, %v675
    %v744 = vpack.c.b16 %v678, %v677
    %v745 = vpack.c.b16 %v680, %v679
    %v746 = vpack.c.b16 %v682, %v681
    %v747 = vpack.c.b16 %v684, %v683
    %v748 = vpack.c.b16 %v686, %v685
    %v749 = vpack.c.b16 %v688, %v687
    %v750 = vpack.c.b16 %v690, %v689
    %v751 = vpack.c.b16 %v692, %v691
    %v752 = vpack.c.b16 %v694, %v693
    %v753 = vpack.c.b16 %v696, %v695
    %v754 = vpack.c.b16 %v698, %v697
    %v755 = vpack.c.b16 %v700, %v699
    %v756 = vpack.c.b16 %v702, %v701
    %v757 = vpack.c.b16 %v704, %v703
    %v758 = vpack.c.b16 %v706, %v705
    %v759 = vpack.c.b16 %v708, %v707
    %v760 = vpack.c.b16 %v710, %v709
    %v761 = vpack.c.b16 %v712, %v711
    %v762 = vpack.c.b16 %v714, %v713
    %811 = vmatpush.bf16.msra.mxu0 %v722
    %812 = vmatpush.bf16.msra.mxu0 %v721
    %813 = vmatpush.bf16.msra.mxu0 %v720
    %814 = vmatpush.bf16.msra.mxu0 %v719
    %815 = vmatpush.bf16.msra.mxu0 %v718
    %816 = vmatpush.bf16.msra.mxu0 %v717
    %817 = vmatpush.bf16.msra.mxu0 %v716
    %818 = vmatpush.bf16.msra.mxu0 %v715
    %819 = vmatmul.bf16.gmra.mxu0 %v427
    %v820 = vpop.f32.mrf.mxu0
    %v821 = vadd.f32 0.0, %v820
    %v822 = vpop.f32.mrf.mxu0
    %v823 = vadd.f32 0.0, %v822
    %824 = vmatmul.bf16.gmra.mxu0 %v433
    %v825 = vpop.f32.mrf.mxu0
    %v826 = vadd.f32 0.0, %v825
    %v827 = vpop.f32.mrf.mxu0
    %v828 = vadd.f32 0.0, %v827
    %829 = vmatmul.bf16.gmra.mxu0 %v439
    %v830 = vpop.f32.mrf.mxu0
    %v831 = vadd.f32 0.0, %v830
    %v832 = vpop.f32.mrf.mxu0
    %v833 = vadd.f32 0.0, %v832
    %834 = vmatmul.bf16.gmra.mxu0 %v445
    %v835 = vpop.f32.mrf.mxu0
    %v836 = vadd.f32 0.0, %v835
    %v837 = vpop.f32.mrf.mxu0
    %v838 = vadd.f32 0.0, %v837
    %839 = vmatmul.bf16.gmra.mxu0 %v451
    %v840 = vpop.f32.mrf.mxu0
    %v841 = vadd.f32 0.0, %v840
    %v842 = vpop.f32.mrf.mxu0
    %v843 = vadd.f32 0.0, %v842
    %844 = vmatmul.bf16.gmra.mxu0 %v457
    %v845 = vpop.f32.mrf.mxu0
    %v846 = vadd.f32 0.0, %v845
    %v847 = vpop.f32.mrf.mxu0
    %v848 = vadd.f32 0.0, %v847
    %849 = vmatmul.bf16.gmra.mxu0 %v463
    %v850 = vpop.f32.mrf.mxu0
    %v851 = vadd.f32 0.0, %v850
    %v852 = vpop.f32.mrf.mxu0
    %v853 = vadd.f32 0.0, %v852
    %854 = vmatmul.bf16.gmra.mxu0 %v469
    %v855 = vpop.f32.mrf.mxu0
    %v856 = vadd.f32 0.0, %v855
    %v857 = vpop.f32.mrf.mxu0
    %v858 = vadd.f32 0.0, %v857
    %859 = vdwg.mxu0
    %860 = vmatpush.bf16.msra.mxu0 %v730
    %861 = vmatpush.bf16.msra.mxu0 %v729
    %862 = vmatpush.bf16.msra.mxu0 %v728
    %863 = vmatpush.bf16.msra.mxu0 %v727
    %864 = vmatpush.bf16.msra.mxu0 %v726
    %865 = vmatpush.bf16.msra.mxu0 %v725
    %866 = vmatpush.bf16.msra.mxu0 %v724
    %867 = vmatpush.bf16.msra.mxu0 %v723
    %868 = vmatmul.bf16.gmra.mxu0 %v428
    %v869 = vpop.f32.mrf.mxu0
    %v870 = vadd.f32 %v821, %v869
    %v871 = vpop.f32.mrf.mxu0
    %v872 = vadd.f32 %v823, %v871
    %873 = vmatmul.bf16.gmra.mxu0 %v434
    %v874 = vpop.f32.mrf.mxu0
    %v875 = vadd.f32 %v826, %v874
    %v876 = vpop.f32.mrf.mxu0
    %v877 = vadd.f32 %v828, %v876
    %878 = vmatmul.bf16.gmra.mxu0 %v440
    %v879 = vpop.f32.mrf.mxu0
    %v880 = vadd.f32 %v831, %v879
    %v881 = vpop.f32.mrf.mxu0
    %v882 = vadd.f32 %v833, %v881
    %883 = vmatmul.bf16.gmra.mxu0 %v446
    %v884 = vpop.f32.mrf.mxu0
    %v885 = vadd.f32 %v836, %v884
    %v886 = vpop.f32.mrf.mxu0
    %v887 = vadd.f32 %v838, %v886
    %888 = vmatmul.bf16.gmra.mxu0 %v452
    %v889 = vpop.f32.mrf.mxu0
    %v890 = vadd.f32 %v841, %v889
    %v891 = vpop.f32.mrf.mxu0
    %v892 = vadd.f32 %v843, %v891
    %893 = vmatmul.bf16.gmra.mxu0 %v458
    %v894 = vpop.f32.mrf.mxu0
    %v895 = vadd.f32 %v846, %v894
    %v896 = vpop.f32.mrf.mxu0
    %v897 = vadd.f32 %v848, %v896
    %898 = vmatmul.bf16.gmra.mxu0 %v464
    %v899 = vpop.f32.mrf.mxu0
    %v900 = vadd.f32 %v851, %v899
    %v901 = vpop.f32.mrf.mxu0
    %v902 = vadd.f32 %v853, %v901
    %903 = vmatmul.bf16.gmra.mxu0 %v470
    %v904 = vpop.f32.mrf.mxu0
    %v905 = vadd.f32 %v856, %v904
    %v906 = vpop.f32.mrf.mxu0
    %v907 = vadd.f32 %v858, %v906
    %908 = vdwg.mxu0
    %909 = vmatpush.bf16.msra.mxu0 %v738
    %910 = vmatpush.bf16.msra.mxu0 %v737
    %911 = vmatpush.bf16.msra.mxu0 %v736
    %912 = vmatpush.bf16.msra.mxu0 %v735
    %913 = vmatpush.bf16.msra.mxu0 %v734
    %914 = vmatpush.bf16.msra.mxu0 %v733
    %915 = vmatpush.bf16.msra.mxu0 %v732
    %916 = vmatpush.bf16.msra.mxu0 %v731
    %917 = vmatmul.bf16.gmra.mxu0 %v429
    %v918 = vpop.f32.mrf.mxu0
    %v919 = vadd.f32 %v870, %v918
    %v920 = vpop.f32.mrf.mxu0
    %v921 = vadd.f32 %v872, %v920
    %922 = vmatmul.bf16.gmra.mxu0 %v435
    %v923 = vpop.f32.mrf.mxu0
    %v924 = vadd.f32 %v875, %v923
    %v925 = vpop.f32.mrf.mxu0
    %v926 = vadd.f32 %v877, %v925
    %927 = vmatmul.bf16.gmra.mxu0 %v441
    %v928 = vpop.f32.mrf.mxu0
    %v929 = vadd.f32 %v880, %v928
    %v930 = vpop.f32.mrf.mxu0
    %v931 = vadd.f32 %v882, %v930
    %932 = vmatmul.bf16.gmra.mxu0 %v447
    %v933 = vpop.f32.mrf.mxu0
    %v934 = vadd.f32 %v885, %v933
    %v935 = vpop.f32.mrf.mxu0
    %v936 = vadd.f32 %v887, %v935
    %937 = vmatmul.bf16.gmra.mxu0 %v453
    %v938 = vpop.f32.mrf.mxu0
    %v939 = vadd.f32 %v890, %v938
    %v940 = vpop.f32.mrf.mxu0
    %v941 = vadd.f32 %v892, %v940
    %942 = vmatmul.bf16.gmra.mxu0 %v459
    %v943 = vpop.f32.mrf.mxu0
    %v944 = vadd.f32 %v895, %v943
    %v945 = vpop.f32.mrf.mxu0
    %v946 = vadd.f32 %v897, %v945
    %947 = vmatmul.bf16.gmra.mxu0 %v465
    %v948 = vpop.f32.mrf.mxu0
    %v949 = vadd.f32 %v900, %v948
    %v950 = vpop.f32.mrf.mxu0
    %v951 = vadd.f32 %v902, %v950
    %952 = vmatmul.bf16.gmra.mxu0 %v471
    %v953 = vpop.f32.mrf.mxu0
    %v954 = vadd.f32 %v905, %v953
    %v955 = vpop.f32.mrf.mxu0
    %v956 = vadd.f32 %v907, %v955
    %957 = vdwg.mxu0
    %958 = vmatpush.bf16.msra.mxu0 %v746
    %959 = vmatpush.bf16.msra.mxu0 %v745
    %960 = vmatpush.bf16.msra.mxu0 %v744
    %961 = vmatpush.bf16.msra.mxu0 %v743
    %962 = vmatpush.bf16.msra.mxu0 %v742
    %963 = vmatpush.bf16.msra.mxu0 %v741
    %964 = vmatpush.bf16.msra.mxu0 %v740
    %965 = vmatpush.bf16.msra.mxu0 %v739
    %966 = vmatmul.bf16.gmra.mxu0 %v430
    %v967 = vpop.f32.mrf.mxu0
    %v968 = vadd.f32 %v919, %v967
    %v969 = vpop.f32.mrf.mxu0
    %v970 = vadd.f32 %v921, %v969
    %971 = vmatmul.bf16.gmra.mxu0 %v436
    %v972 = vpop.f32.mrf.mxu0
    %v973 = vadd.f32 %v924, %v972
    %v974 = vpop.f32.mrf.mxu0
    %v975 = vadd.f32 %v926, %v974
    %976 = vmatmul.bf16.gmra.mxu0 %v442
    %v977 = vpop.f32.mrf.mxu0
    %v978 = vadd.f32 %v929, %v977
    %v979 = vpop.f32.mrf.mxu0
    %v980 = vadd.f32 %v931, %v979
    %981 = vmatmul.bf16.gmra.mxu0 %v448
    %v982 = vpop.f32.mrf.mxu0
    %v983 = vadd.f32 %v934, %v982
    %v984 = vpop.f32.mrf.mxu0
    %v985 = vadd.f32 %v936, %v984
    %986 = vmatmul.bf16.gmra.mxu0 %v454
    %v987 = vpop.f32.mrf.mxu0
    %v988 = vadd.f32 %v939, %v987
    %v989 = vpop.f32.mrf.mxu0
    %v990 = vadd.f32 %v941, %v989
    %991 = vmatmul.bf16.gmra.mxu0 %v460
    %v992 = vpop.f32.mrf.mxu0
    %v993 = vadd.f32 %v944, %v992
    %v994 = vpop.f32.mrf.mxu0
    %v995 = vadd.f32 %v946, %v994
    %996 = vmatmul.bf16.gmra.mxu0 %v466
    %v997 = vpop.f32.mrf.mxu0
    %v998 = vadd.f32 %v949, %v997
    %v999 = vpop.f32.mrf.mxu0
    %v1000 = vadd.f32 %v951, %v999
    %1001 = vmatmul.bf16.gmra.mxu0 %v472
    %v1002 = vpop.f32.mrf.mxu0
    %v1003 = vadd.f32 %v954, %v1002
    %v1004 = vpop.f32.mrf.mxu0
    %v1005 = vadd.f32 %v956, %v1004
    %1006 = vdwg.mxu0
    %1007 = vmatpush.bf16.msra.mxu0 %v754
    %1008 = vmatpush.bf16.msra.mxu0 %v753
    %1009 = vmatpush.bf16.msra.mxu0 %v752
    %1010 = vmatpush.bf16.msra.mxu0 %v751
    %1011 = vmatpush.bf16.msra.mxu0 %v750
    %1012 = vmatpush.bf16.msra.mxu0 %v749
    %1013 = vmatpush.bf16.msra.mxu0 %v748
    %1014 = vmatpush.bf16.msra.mxu0 %v747
    %1015 = vmatmul.bf16.gmra.mxu0 %v431
    %v1016 = vpop.f32.mrf.mxu0
    %v1017 = vadd.f32 %v968, %v1016
    %v1018 = vpop.f32.mrf.mxu0
    %v1019 = vadd.f32 %v970, %v1018
    %1020 = vmatmul.bf16.gmra.mxu0 %v437
    %v1021 = vpop.f32.mrf.mxu0
    %v1022 = vadd.f32 %v973, %v1021
    %v1023 = vpop.f32.mrf.mxu0
    %v1024 = vadd.f32 %v975, %v1023
    %1025 = vmatmul.bf16.gmra.mxu0 %v443
    %v1026 = vpop.f32.mrf.mxu0
    %v1027 = vadd.f32 %v978, %v1026
    %v1028 = vpop.f32.mrf.mxu0
    %v1029 = vadd.f32 %v980, %v1028
    %1030 = vmatmul.bf16.gmra.mxu0 %v449
    %v1031 = vpop.f32.mrf.mxu0
    %v1032 = vadd.f32 %v983, %v1031
    %v1033 = vpop.f32.mrf.mxu0
    %v1034 = vadd.f32 %v985, %v1033
    %1035 = vmatmul.bf16.gmra.mxu0 %v455
    %v1036 = vpop.f32.mrf.mxu0
    %v1037 = vadd.f32 %v988, %v1036
    %v1038 = vpop.f32.mrf.mxu0
    %v1039 = vadd.f32 %v990, %v1038
    %1040 = vmatmul.bf16.gmra.mxu0 %v461
    %v1041 = vpop.f32.mrf.mxu0
    %v1042 = vadd.f32 %v993, %v1041
    %v1043 = vpop.f32.mrf.mxu0
    %v1044 = vadd.f32 %v995, %v1043
    %1045 = vmatmul.bf16.gmra.mxu0 %v467
    %v1046 = vpop.f32.mrf.mxu0
    %v1047 = vadd.f32 %v998, %v1046
    %v1048 = vpop.f32.mrf.mxu0
    %v1049 = vadd.f32 %v1000, %v1048
    %1050 = vmatmul.bf16.gmra.mxu0 %v473
    %v1051 = vpop.f32.mrf.mxu0
    %v1052 = vadd.f32 %v1003, %v1051
    %v1053 = vpop.f32.mrf.mxu0
    %v1054 = vadd.f32 %v1005, %v1053
    %1055 = vdwg.mxu0
    %1056 = vmatpush.bf16.msra.mxu0 %v762
    %1057 = vmatpush.bf16.msra.mxu0 %v761
    %1058 = vmatpush.bf16.msra.mxu0 %v760
    %1059 = vmatpush.bf16.msra.mxu0 %v759
    %1060 = vmatpush.bf16.msra.mxu0 %v758
    %1061 = vmatpush.bf16.msra.mxu0 %v757
    %1062 = vmatpush.bf16.msra.mxu0 %v756
    %1063 = vmatpush.bf16.msra.mxu0 %v755
    %1064 = vmatmul.bf16.gmra.mxu0 %v432
    %v1065 = vpop.f32.mrf.mxu0
    %v1066 = vadd.f32 %v1017, %v1065
    %v1067 = vpop.f32.mrf.mxu0
    %v1068 = vadd.f32 %v1019, %v1067
    %1069 = vmatmul.bf16.gmra.mxu0 %v438
    %v1070 = vpop.f32.mrf.mxu0
    %v1071 = vadd.f32 %v1022, %v1070
    %v1072 = vpop.f32.mrf.mxu0
    %v1073 = vadd.f32 %v1024, %v1072
    %1074 = vmatmul.bf16.gmra.mxu0 %v444
    %v1075 = vpop.f32.mrf.mxu0
    %v1076 = vadd.f32 %v1027, %v1075
    %v1077 = vpop.f32.mrf.mxu0
    %v1078 = vadd.f32 %v1029, %v1077
    %1079 = vmatmul.bf16.gmra.mxu0 %v450
    %v1080 = vpop.f32.mrf.mxu0
    %v1081 = vadd.f32 %v1032, %v1080
    %v1082 = vpop.f32.mrf.mxu0
    %v1083 = vadd.f32 %v1034, %v1082
    %1084 = vmatmul.bf16.gmra.mxu0 %v456
    %v1085 = vpop.f32.mrf.mxu0
    %v1086 = vadd.f32 %v1037, %v1085
    %v1087 = vpop.f32.mrf.mxu0
    %v1088 = vadd.f32 %v1039, %v1087
    %1089 = vmatmul.bf16.gmra.mxu0 %v462
    %v1090 = vpop.f32.mrf.mxu0
    %v1091 = vadd.f32 %v1042, %v1090
    %v1092 = vpop.f32.mrf.mxu0
    %v1093 = vadd.f32 %v1044, %v1092
    %1094 = vmatmul.bf16.gmra.mxu0 %v468
    %v1095 = vpop.f32.mrf.mxu0
    %v1096 = vadd.f32 %v1047, %v1095
    %v1097 = vpop.f32.mrf.mxu0
    %v1098 = vadd.f32 %v1049, %v1097
    %1099 = vmatmul.bf16.gmra.mxu0 %v474
    %v1100 = vpop.f32.mrf.mxu0
    %v1101 = vadd.f32 %v1052, %v1100
    %v1102 = vpop.f32.mrf.mxu0
    %v1103 = vadd.f32 %v1054, %v1102
    %1104 = vdwg.mxu0
    %vm1105 = vcmp.gt.f32.partialorder %v1066, 0.0
    %vm1106 = vcmp.gt.f32.partialorder %v1068, 0.0
    %vm1107 = vcmp.gt.f32.partialorder %v1071, 0.0
    %vm1108 = vcmp.gt.f32.partialorder %v1073, 0.0
    %vm1109 = vcmp.gt.f32.partialorder %v1076, 0.0
    %vm1110 = vcmp.gt.f32.partialorder %v1078, 0.0
    %vm1111 = vcmp.gt.f32.partialorder %v1081, 0.0
    %vm1112 = vcmp.gt.f32.partialorder %v1083, 0.0
    %vm1113 = vcmp.gt.f32.partialorder %v1086, 0.0
    %vm1114 = vcmp.gt.f32.partialorder %v1088, 0.0
    %vm1115 = vcmp.gt.f32.partialorder %v1091, 0.0
    %vm1116 = vcmp.gt.f32.partialorder %v1093, 0.0
    %vm1117 = vcmp.gt.f32.partialorder %v1096, 0.0
    %vm1118 = vcmp.gt.f32.partialorder %v1098, 0.0
    %vm1119 = vcmp.gt.f32.partialorder %v1101, 0.0
    %vm1120 = vcmp.gt.f32.partialorder %v1103, 0.0
    %v1121 = vmul.f32 %v1066, 0.01
    %v1122 = vmul.f32 %v1068, 0.01
    %v1123 = vmul.f32 %v1071, 0.01
    %v1124 = vmul.f32 %v1073, 0.01
    %v1125 = vmul.f32 %v1076, 0.01
    %v1126 = vmul.f32 %v1078, 0.01
    %v1127 = vmul.f32 %v1081, 0.01
    %v1128 = vmul.f32 %v1083, 0.01
    %v1129 = vmul.f32 %v1086, 0.01
    %v1130 = vmul.f32 %v1088, 0.01
    %v1131 = vmul.f32 %v1091, 0.01
    %v1132 = vmul.f32 %v1093, 0.01
    %v1133 = vmul.f32 %v1096, 0.01
    %v1134 = vmul.f32 %v1098, 0.01
    %v1135 = vmul.f32 %v1101, 0.01
    %v1136 = vmul.f32 %v1103, 0.01
    %v1137 = vsel %vm1105, %v1066, %v1121
    %v1138 = vsel %vm1106, %v1068, %v1122
    %v1139 = vsel %vm1107, %v1071, %v1123
    %v1140 = vsel %vm1108, %v1073, %v1124
    %v1141 = vsel %vm1109, %v1076, %v1125
    %v1142 = vsel %vm1110, %v1078, %v1126
    %v1143 = vsel %vm1111, %v1081, %v1127
    %v1144 = vsel %vm1112, %v1083, %v1128
    %v1145 = vsel %vm1113, %v1086, %v1129
    %v1146 = vsel %vm1114, %v1088, %v1130
    %v1147 = vsel %vm1115, %v1091, %v1131
    %v1148 = vsel %vm1116, %v1093, %v1132
    %v1149 = vsel %vm1117, %v1096, %v1133
    %v1150 = vsel %vm1118, %v1098, %v1134
    %v1151 = vsel %vm1119, %v1101, %v1135
    %v1152 = vsel %vm1120, %v1103, %v1136
    %v1153 = vld [vmem:[#allocation7] sm:$0xf]
    %v1154 = vld [vmem:[#allocation7 + $0x4] sm:$0xf]
    %v1155 = vld [vmem:[#allocation7 + $0x8] sm:$0xf]
    %v1156 = vld [vmem:[#allocation7 + $0xc] sm:$0xf]
    %v1157 = vld [vmem:[#allocation7 + $0x10] sm:$0xf]
    %v1158 = vld [vmem:[#allocation7 + $0x14] sm:$0xf]
    %v1159 = vld [vmem:[#allocation7 + $0x18] sm:$0xf]
    %v1160 = vld [vmem:[#allocation7 + $0x1c] sm:$0xf]
    %v1161 = vld [vmem:[#allocation7 + $0x20] sm:$0xf]
    %v1162 = vld [vmem:[#allocation7 + $0x24] sm:$0xf]
    %v1163 = vld [vmem:[#allocation7 + $0x28] sm:$0xf]
    %v1164 = vld [vmem:[#allocation7 + $0x2c] sm:$0xf]
    %v1165 = vld [vmem:[#allocation7 + $0x30] sm:$0xf]
    %v1166 = vld [vmem:[#allocation7 + $0x34] sm:$0xf]
    %v1167 = vld [vmem:[#allocation7 + $0x38] sm:$0xf]
    %v1168 = vld [vmem:[#allocation7 + $0x3c] sm:$0xf]
    %v1169 = vld [vmem:[#allocation7 + $0x40] sm:$0xf]
    %v1170 = vld [vmem:[#allocation7 + $0x44] sm:$0xf]
    %v1171 = vld [vmem:[#allocation7 + $0x48] sm:$0xf]
    %v1172 = vld [vmem:[#allocation7 + $0x4c] sm:$0xf]
    %v1173 = vld [vmem:[#allocation7 + $0x50] sm:$0xf]
    %v1174 = vld [vmem:[#allocation7 + $0x54] sm:$0xf]
    %v1175 = vld [vmem:[#allocation7 + $0x58] sm:$0xf]
    %v1176 = vld [vmem:[#allocation7 + $0x5c] sm:$0xf]
    %v1177 = vld [vmem:[#allocation7 + $0x60] sm:$0xf]
    %v1178 = vld [vmem:[#allocation7 + $0x64] sm:$0xf]
    %v1179 = vld [vmem:[#allocation7 + $0x68] sm:$0xf]
    %v1180 = vld [vmem:[#allocation7 + $0x6c] sm:$0xf]
    %v1181 = vld [vmem:[#allocation7 + $0x70] sm:$0xf]
    %v1182 = vld [vmem:[#allocation7 + $0x74] sm:$0xf]
    %v1183 = vld [vmem:[#allocation7 + $0x78] sm:$0xf]
    %v1184 = vld [vmem:[#allocation7 + $0x7c] sm:$0xf]
    %v1185 = vpack.c.bf16 %v1138, %v1137
    %v1186 = vpack.c.bf16 %v1140, %v1139
    %v1187 = vpack.c.bf16 %v1142, %v1141
    %v1188 = vpack.c.bf16 %v1144, %v1143
    %v1189 = vpack.c.bf16 %v1146, %v1145
    %v1190 = vpack.c.bf16 %v1148, %v1147
    %v1191 = vpack.c.bf16 %v1150, %v1149
    %v1192 = vpack.c.bf16 %v1152, %v1151
    %v1193 = vld [vmem:[#allocation8] sm:$0xff]
    %v1194 = vld [vmem:[#allocation8 + $0x8] sm:$0xff]
    %v1195 = vld [vmem:[#allocation8 + $0x10] sm:$0xff]
    %v1196 = vld [vmem:[#allocation8 + $0x18] sm:$0xff]
    %v1197 = vld [vmem:[#allocation8 + $0x20] sm:$0xff]
    %v1198 = vld [vmem:[#allocation8 + $0x28] sm:$0xff]
    %v1199 = vld [vmem:[#allocation8 + $0x30] sm:$0xff]
    %v1200 = vld [vmem:[#allocation8 + $0x38] sm:$0xff]
    %v1201 = vld [vmem:[#allocation8 + $0x40] sm:$0xff]
    %v1202 = vld [vmem:[#allocation8 + $0x48] sm:$0xff]
    %v1203 = vld [vmem:[#allocation8 + $0x50] sm:$0xff]
    %v1204 = vld [vmem:[#allocation8 + $0x58] sm:$0xff]
    %v1205 = vld [vmem:[#allocation8 + $0x60] sm:$0xff]
    %v1206 = vld [vmem:[#allocation8 + $0x68] sm:$0xff]
    %v1207 = vld [vmem:[#allocation8 + $0x70] sm:$0xff]
    %v1208 = vld [vmem:[#allocation8 + $0x78] sm:$0xff]
    %v1209 = vld [vmem:[#allocation8 + $0x80] sm:$0xff]
    %v1210 = vld [vmem:[#allocation8 + $0x88] sm:$0xff]
    %v1211 = vld [vmem:[#allocation8 + $0x90] sm:$0xff]
    %v1212 = vld [vmem:[#allocation8 + $0x98] sm:$0xff]
    %v1213 = vld [vmem:[#allocation8 + $0xa0] sm:$0xff]
    %v1214 = vld [vmem:[#allocation8 + $0xa8] sm:$0xff]
    %v1215 = vld [vmem:[#allocation8 + $0xb0] sm:$0xff]
    %v1216 = vld [vmem:[#allocation8 + $0xb8] sm:$0xff]
    %v1217 = vld [vmem:[#allocation8 + $0xc0] sm:$0xff]
    %v1218 = vld [vmem:[#allocation8 + $0xc8] sm:$0xff]
    %v1219 = vld [vmem:[#allocation8 + $0xd0] sm:$0xff]
    %v1220 = vld [vmem:[#allocation8 + $0xd8] sm:$0xff]
    %v1221 = vld [vmem:[#allocation8 + $0xe0] sm:$0xff]
    %v1222 = vld [vmem:[#allocation8 + $0xe8] sm:$0xff]
    %v1223 = vld [vmem:[#allocation8 + $0xf0] sm:$0xff]
    %v1224 = vld [vmem:[#allocation8 + $0xf8] sm:$0xff]
    %v1257 = vunpack.c.l.b16 %v1153
    %v1258 = vunpack.c.l.b16 %v1154
    %v1259 = vunpack.c.l.b16 %v1155
    %v1260 = vunpack.c.l.b16 %v1156
    %v1261 = vunpack.c.l.b16 %v1157
    %v1262 = vunpack.c.l.b16 %v1158
    %v1263 = vunpack.c.l.b16 %v1159
    %v1264 = vunpack.c.l.b16 %v1160
    %v1265 = vunpack.c.l.b16 %v1161
    %v1266 = vunpack.c.l.b16 %v1162
    %v1267 = vunpack.c.l.b16 %v1163
    %v1268 = vunpack.c.l.b16 %v1164
    %v1269 = vunpack.c.l.b16 %v1165
    %v1270 = vunpack.c.l.b16 %v1166
    %v1271 = vunpack.c.l.b16 %v1167
    %v1272 = vunpack.c.l.b16 %v1168
    %v1273 = vunpack.c.l.b16 %v1169
    %v1274 = vunpack.c.l.b16 %v1170
    %v1275 = vunpack.c.l.b16 %v1171
    %v1276 = vunpack.c.l.b16 %v1172
    %v1277 = vunpack.c.l.b16 %v1173
    %v1278 = vunpack.c.l.b16 %v1174
    %v1279 = vunpack.c.l.b16 %v1175
    %v1280 = vunpack.c.l.b16 %v1176
    %v1281 = vunpack.c.l.b16 %v1177
    %v1282 = vunpack.c.l.b16 %v1178
    %v1283 = vunpack.c.l.b16 %v1179
    %v1284 = vunpack.c.l.b16 %v1180
    %v1285 = vunpack.c.l.b16 %v1181
    %v1286 = vunpack.c.l.b16 %v1182
    %v1287 = vunpack.c.l.b16 %v1183
    %v1288 = vunpack.c.l.b16 %v1184
    %v1289 = vpack.c.b16 %v1258, %v1257
    %v1290 = vpack.c.b16 %v1260, %v1259
    %v1291 = vpack.c.b16 %v1262, %v1261
    %v1292 = vpack.c.b16 %v1264, %v1263
    %v1293 = vpack.c.b16 %v1266, %v1265
    %v1294 = vpack.c.b16 %v1268, %v1267
    %v1295 = vpack.c.b16 %v1270, %v1269
    %v1296 = vpack.c.b16 %v1272, %v1271
    %v1297 = vpack.c.b16 %v1274, %v1273
    %v1298 = vpack.c.b16 %v1276, %v1275
    %v1299 = vpack.c.b16 %v1278, %v1277
    %v1300 = vpack.c.b16 %v1280, %v1279
    %v1301 = vpack.c.b16 %v1282, %v1281
    %v1302 = vpack.c.b16 %v1284, %v1283
    %v1303 = vpack.c.b16 %v1286, %v1285
    %v1304 = vpack.c.b16 %v1288, %v1287
    %1321 = vmatpush.bf16.msra.mxu0 %v1192
    %1322 = vmatpush.bf16.msra.mxu0 %v1191
    %1323 = vmatpush.bf16.msra.mxu0 %v1190
    %1324 = vmatpush.bf16.msra.mxu0 %v1189
    %1325 = vmatpush.bf16.msra.mxu0 %v1188
    %1326 = vmatpush.bf16.msra.mxu0 %v1187
    %1327 = vmatpush.bf16.msra.mxu0 %v1186
    %1328 = vmatpush.bf16.msra.mxu0 %v1185
    %1329 = vmatmul.bf16.gmra.mxu0 %v1289
    %v1330 = vpop.f32.mrf.mxu0
    %v1331 = vadd.f32 %v1193, %v1330
    %v1332 = vpop.f32.mrf.mxu0
    %v1333 = vadd.f32 %v1194, %v1332
    %1334 = vmatmul.bf16.gmra.mxu0 %v1290
    %v1335 = vpop.f32.mrf.mxu0
    %v1336 = vadd.f32 %v1195, %v1335
    %v1337 = vpop.f32.mrf.mxu0
    %v1338 = vadd.f32 %v1196, %v1337
    %1339 = vmatmul.bf16.gmra.mxu0 %v1291
    %v1340 = vpop.f32.mrf.mxu0
    %v1341 = vadd.f32 %v1197, %v1340
    %v1342 = vpop.f32.mrf.mxu0
    %v1343 = vadd.f32 %v1198, %v1342
    %1344 = vmatmul.bf16.gmra.mxu0 %v1292
    %v1345 = vpop.f32.mrf.mxu0
    %v1346 = vadd.f32 %v1199, %v1345
    %v1347 = vpop.f32.mrf.mxu0
    %v1348 = vadd.f32 %v1200, %v1347
    %1349 = vmatmul.bf16.gmra.mxu0 %v1293
    %v1350 = vpop.f32.mrf.mxu0
    %v1351 = vadd.f32 %v1201, %v1350
    %v1352 = vpop.f32.mrf.mxu0
    %v1353 = vadd.f32 %v1202, %v1352
    %1354 = vmatmul.bf16.gmra.mxu0 %v1294
    %v1355 = vpop.f32.mrf.mxu0
    %v1356 = vadd.f32 %v1203, %v1355
    %v1357 = vpop.f32.mrf.mxu0
    %v1358 = vadd.f32 %v1204, %v1357
    %1359 = vmatmul.bf16.gmra.mxu0 %v1295
    %v1360 = vpop.f32.mrf.mxu0
    %v1361 = vadd.f32 %v1205, %v1360
    %v1362 = vpop.f32.mrf.mxu0
    %v1363 = vadd.f32 %v1206, %v1362
    %1364 = vmatmul.bf16.gmra.mxu0 %v1296
    %v1365 = vpop.f32.mrf.mxu0
    %v1366 = vadd.f32 %v1207, %v1365
    %v1367 = vpop.f32.mrf.mxu0
    %v1368 = vadd.f32 %v1208, %v1367
    %1369 = vmatmul.bf16.gmra.mxu0 %v1297
    %v1370 = vpop.f32.mrf.mxu0
    %v1371 = vadd.f32 %v1209, %v1370
    %v1372 = vpop.f32.mrf.mxu0
    %v1373 = vadd.f32 %v1210, %v1372
    %1374 = vmatmul.bf16.gmra.mxu0 %v1298
    %v1375 = vpop.f32.mrf.mxu0
    %v1376 = vadd.f32 %v1211, %v1375
    %v1377 = vpop.f32.mrf.mxu0
    %v1378 = vadd.f32 %v1212, %v1377
    %1379 = vmatmul.bf16.gmra.mxu0 %v1299
    %v1380 = vpop.f32.mrf.mxu0
    %v1381 = vadd.f32 %v1213, %v1380
    %v1382 = vpop.f32.mrf.mxu0
    %v1383 = vadd.f32 %v1214, %v1382
    %1384 = vmatmul.bf16.gmra.mxu0 %v1300
    %v1385 = vpop.f32.mrf.mxu0
    %v1386 = vadd.f32 %v1215, %v1385
    %v1387 = vpop.f32.mrf.mxu0
    %v1388 = vadd.f32 %v1216, %v1387
    %1389 = vmatmul.bf16.gmra.mxu0 %v1301
    %v1390 = vpop.f32.mrf.mxu0
    %v1391 = vadd.f32 %v1217, %v1390
    %v1392 = vpop.f32.mrf.mxu0
    %v1393 = vadd.f32 %v1218, %v1392
    %1394 = vmatmul.bf16.gmra.mxu0 %v1302
    %v1395 = vpop.f32.mrf.mxu0
    %v1396 = vadd.f32 %v1219, %v1395
    %v1397 = vpop.f32.mrf.mxu0
    %v1398 = vadd.f32 %v1220, %v1397
    %1399 = vmatmul.bf16.gmra.mxu0 %v1303
    %v1400 = vpop.f32.mrf.mxu0
    %v1401 = vadd.f32 %v1221, %v1400
    %v1402 = vpop.f32.mrf.mxu0
    %v1403 = vadd.f32 %v1222, %v1402
    %1404 = vmatmul.bf16.gmra.mxu0 %v1304
    %v1405 = vpop.f32.mrf.mxu0
    %v1406 = vadd.f32 %v1223, %v1405
    %v1407 = vpop.f32.mrf.mxu0
    %v1408 = vadd.f32 %v1224, %v1407
    %1409 = vdwg.mxu0
    %vm1410 = vcmp.gt.f32.partialorder %v1331, 0.0
    %vm1411 = vcmp.gt.f32.partialorder %v1333, 0.0
    %vm1412 = vcmp.gt.f32.partialorder %v1336, 0.0
    %vm1413 = vcmp.gt.f32.partialorder %v1338, 0.0
    %vm1414 = vcmp.gt.f32.partialorder %v1341, 0.0
    %vm1415 = vcmp.gt.f32.partialorder %v1343, 0.0
    %vm1416 = vcmp.gt.f32.partialorder %v1346, 0.0
    %vm1417 = vcmp.gt.f32.partialorder %v1348, 0.0
    %vm1418 = vcmp.gt.f32.partialorder %v1351, 0.0
    %vm1419 = vcmp.gt.f32.partialorder %v1353, 0.0
    %vm1420 = vcmp.gt.f32.partialorder %v1356, 0.0
    %vm1421 = vcmp.gt.f32.partialorder %v1358, 0.0
    %vm1422 = vcmp.gt.f32.partialorder %v1361, 0.0
    %vm1423 = vcmp.gt.f32.partialorder %v1363, 0.0
    %vm1424 = vcmp.gt.f32.partialorder %v1366, 0.0
    %vm1425 = vcmp.gt.f32.partialorder %v1368, 0.0
    %vm1426 = vcmp.gt.f32.partialorder %v1371, 0.0
    %vm1427 = vcmp.gt.f32.partialorder %v1373, 0.0
    %vm1428 = vcmp.gt.f32.partialorder %v1376, 0.0
    %vm1429 = vcmp.gt.f32.partialorder %v1378, 0.0
    %vm1430 = vcmp.gt.f32.partialorder %v1381, 0.0
    %vm1431 = vcmp.gt.f32.partialorder %v1383, 0.0
    %vm1432 = vcmp.gt.f32.partialorder %v1386, 0.0
    %vm1433 = vcmp.gt.f32.partialorder %v1388, 0.0
    %vm1434 = vcmp.gt.f32.partialorder %v1391, 0.0
    %vm1435 = vcmp.gt.f32.partialorder %v1393, 0.0
    %vm1436 = vcmp.gt.f32.partialorder %v1396, 0.0
    %vm1437 = vcmp.gt.f32.partialorder %v1398, 0.0
    %vm1438 = vcmp.gt.f32.partialorder %v1401, 0.0
    %vm1439 = vcmp.gt.f32.partialorder %v1403, 0.0
    %vm1440 = vcmp.gt.f32.partialorder %v1406, 0.0
    %vm1441 = vcmp.gt.f32.partialorder %v1408, 0.0
    %v1442 = vmul.f32 %v1331, 0.01
    %v1443 = vmul.f32 %v1333, 0.01
    %v1444 = vmul.f32 %v1336, 0.01
    %v1445 = vmul.f32 %v1338, 0.01
    %v1446 = vmul.f32 %v1341, 0.01
    %v1447 = vmul.f32 %v1343, 0.01
    %v1448 = vmul.f32 %v1346, 0.01
    %v1449 = vmul.f32 %v1348, 0.01
    %v1450 = vmul.f32 %v1351, 0.01
    %v1451 = vmul.f32 %v1353, 0.01
    %v1452 = vmul.f32 %v1356, 0.01
    %v1453 = vmul.f32 %v1358, 0.01
    %v1454 = vmul.f32 %v1361, 0.01
    %v1455 = vmul.f32 %v1363, 0.01
    %v1456 = vmul.f32 %v1366, 0.01
    %v1457 = vmul.f32 %v1368, 0.01
    %v1458 = vmul.f32 %v1371, 0.01
    %v1459 = vmul.f32 %v1373, 0.01
    %v1460 = vmul.f32 %v1376, 0.01
    %v1461 = vmul.f32 %v1378, 0.01
    %v1462 = vmul.f32 %v1381, 0.01
    %v1463 = vmul.f32 %v1383, 0.01
    %v1464 = vmul.f32 %v1386, 0.01
    %v1465 = vmul.f32 %v1388, 0.01
    %v1466 = vmul.f32 %v1391, 0.01
    %v1467 = vmul.f32 %v1393, 0.01
    %v1468 = vmul.f32 %v1396, 0.01
    %v1469 = vmul.f32 %v1398, 0.01
    %v1470 = vmul.f32 %v1401, 0.01
    %v1471 = vmul.f32 %v1403, 0.01
    %v1472 = vmul.f32 %v1406, 0.01
    %v1473 = vmul.f32 %v1408, 0.01
    %v1474 = vsel %vm1410, %v1331, %v1442
    %v1475 = vsel %vm1411, %v1333, %v1443
    %v1476 = vsel %vm1412, %v1336, %v1444
    %v1477 = vsel %vm1413, %v1338, %v1445
    %v1478 = vsel %vm1414, %v1341, %v1446
    %v1479 = vsel %vm1415, %v1343, %v1447
    %v1480 = vsel %vm1416, %v1346, %v1448
    %v1481 = vsel %vm1417, %v1348, %v1449
    %v1482 = vsel %vm1418, %v1351, %v1450
    %v1483 = vsel %vm1419, %v1353, %v1451
    %v1484 = vsel %vm1420, %v1356, %v1452
    %v1485 = vsel %vm1421, %v1358, %v1453
    %v1486 = vsel %vm1422, %v1361, %v1454
    %v1487 = vsel %vm1423, %v1363, %v1455
    %v1488 = vsel %vm1424, %v1366, %v1456
    %v1489 = vsel %vm1425, %v1368, %v1457
    %v1490 = vsel %vm1426, %v1371, %v1458
    %v1491 = vsel %vm1427, %v1373, %v1459
    %v1492 = vsel %vm1428, %v1376, %v1460
    %v1493 = vsel %vm1429, %v1378, %v1461
    %v1494 = vsel %vm1430, %v1381, %v1462
    %v1495 = vsel %vm1431, %v1383, %v1463
    %v1496 = vsel %vm1432, %v1386, %v1464
    %v1497 = vsel %vm1433, %v1388, %v1465
    %v1498 = vsel %vm1434, %v1391, %v1466
    %v1499 = vsel %vm1435, %v1393, %v1467
    %v1500 = vsel %vm1436, %v1396, %v1468
    %v1501 = vsel %vm1437, %v1398, %v1469
    %v1502 = vsel %vm1438, %v1401, %v1470
    %v1503 = vsel %vm1439, %v1403, %v1471
    %v1504 = vsel %vm1440, %v1406, %v1472
    %v1505 = vsel %vm1441, %v1408, %v1473
    %v1506 = vld [vmem:[#allocation10] sm:$0xff]
    %v1507 = vld [vmem:[#allocation10 + $0x8] sm:$0xff]
    %v1508 = vld [vmem:[#allocation10 + $0x10] sm:$0xff]
    %v1509 = vld [vmem:[#allocation10 + $0x18] sm:$0xff]
    %v1510 = vld [vmem:[#allocation10 + $0x20] sm:$0xff]
    %v1511 = vld [vmem:[#allocation10 + $0x28] sm:$0xff]
    %v1512 = vld [vmem:[#allocation10 + $0x30] sm:$0xff]
    %v1513 = vld [vmem:[#allocation10 + $0x38] sm:$0xff]
    %v1514 = vld [vmem:[#allocation10 + $0x40] sm:$0xff]
    %v1515 = vld [vmem:[#allocation10 + $0x48] sm:$0xff]
    %v1516 = vld [vmem:[#allocation10 + $0x50] sm:$0xff]
    %v1517 = vld [vmem:[#allocation10 + $0x58] sm:$0xff]
    %v1518 = vld [vmem:[#allocation10 + $0x60] sm:$0xff]
    %v1519 = vld [vmem:[#allocation10 + $0x68] sm:$0xff]
    %v1520 = vld [vmem:[#allocation10 + $0x70] sm:$0xff]
    %v1521 = vld [vmem:[#allocation10 + $0x78] sm:$0xff]
    %v1522 = vpack.c.bf16 %v1475, %v1474
    %v1523 = vpack.c.bf16 %v1477, %v1476
    %v1524 = vpack.c.bf16 %v1479, %v1478
    %v1525 = vpack.c.bf16 %v1481, %v1480
    %v1526 = vpack.c.bf16 %v1483, %v1482
    %v1527 = vpack.c.bf16 %v1485, %v1484
    %v1528 = vpack.c.bf16 %v1487, %v1486
    %v1529 = vpack.c.bf16 %v1489, %v1488
    %v1530 = vpack.c.bf16 %v1491, %v1490
    %v1531 = vpack.c.bf16 %v1493, %v1492
    %v1532 = vpack.c.bf16 %v1495, %v1494
    %v1533 = vpack.c.bf16 %v1497, %v1496
    %v1534 = vpack.c.bf16 %v1499, %v1498
    %v1535 = vpack.c.bf16 %v1501, %v1500
    %v1536 = vpack.c.bf16 %v1503, %v1502
    %v1537 = vpack.c.bf16 %v1505, %v1504
    %v1538 = vld [vmem:[#allocation11] sm:$0xff]
    %v1539 = vld [vmem:[#allocation11 + $0x8] sm:$0xff]
    %v1540 = vld [vmem:[#allocation11 + $0x10] sm:$0xff]
    %v1541 = vld [vmem:[#allocation11 + $0x18] sm:$0xff]
    %v1542 = vld [vmem:[#allocation11 + $0x20] sm:$0xff]
    %v1543 = vld [vmem:[#allocation11 + $0x28] sm:$0xff]
    %v1544 = vld [vmem:[#allocation11 + $0x30] sm:$0xff]
    %v1545 = vld [vmem:[#allocation11 + $0x38] sm:$0xff]
    %v1546 = vld [vmem:[#allocation11 + $0x40] sm:$0xff]
    %v1547 = vld [vmem:[#allocation11 + $0x48] sm:$0xff]
    %v1548 = vld [vmem:[#allocation11 + $0x50] sm:$0xff]
    %v1549 = vld [vmem:[#allocation11 + $0x58] sm:$0xff]
    %v1550 = vld [vmem:[#allocation11 + $0x60] sm:$0xff]
    %v1551 = vld [vmem:[#allocation11 + $0x68] sm:$0xff]
    %v1552 = vld [vmem:[#allocation11 + $0x70] sm:$0xff]
    %v1553 = vld [vmem:[#allocation11 + $0x78] sm:$0xff]
    %v1570 = vunpack.c.l.b16 %v1506
    %v1571 = vunpack.c.h.b16 %v1506
    %v1572 = vunpack.c.l.b16 %v1507
    %v1573 = vunpack.c.h.b16 %v1507
    %v1574 = vunpack.c.l.b16 %v1508
    %v1575 = vunpack.c.h.b16 %v1508
    %v1576 = vunpack.c.l.b16 %v1509
    %v1577 = vunpack.c.h.b16 %v1509
    %v1578 = vunpack.c.l.b16 %v1510
    %v1579 = vunpack.c.h.b16 %v1510
    %v1580 = vunpack.c.l.b16 %v1511
    %v1581 = vunpack.c.h.b16 %v1511
    %v1582 = vunpack.c.l.b16 %v1512
    %v1583 = vunpack.c.h.b16 %v1512
    %v1584 = vunpack.c.l.b16 %v1513
    %v1585 = vunpack.c.h.b16 %v1513
    %v1586 = vunpack.c.l.b16 %v1514
    %v1587 = vunpack.c.h.b16 %v1514
    %v1588 = vunpack.c.l.b16 %v1515
    %v1589 = vunpack.c.h.b16 %v1515
    %v1590 = vunpack.c.l.b16 %v1516
    %v1591 = vunpack.c.h.b16 %v1516
    %v1592 = vunpack.c.l.b16 %v1517
    %v1593 = vunpack.c.h.b16 %v1517
    %v1594 = vunpack.c.l.b16 %v1518
    %v1595 = vunpack.c.h.b16 %v1518
    %v1596 = vunpack.c.l.b16 %v1519
    %v1597 = vunpack.c.h.b16 %v1519
    %v1598 = vunpack.c.l.b16 %v1520
    %v1599 = vunpack.c.h.b16 %v1520
    %v1600 = vunpack.c.l.b16 %v1521
    %v1601 = vunpack.c.h.b16 %v1521
    %v1602 = vpack.c.b16 %v1572, %v1570
    %v1603 = vpack.c.b16 %v1573, %v1571
    %v1604 = vpack.c.b16 %v1576, %v1574
    %v1605 = vpack.c.b16 %v1577, %v1575
    %v1606 = vpack.c.b16 %v1580, %v1578
    %v1607 = vpack.c.b16 %v1581, %v1579
    %v1608 = vpack.c.b16 %v1584, %v1582
    %v1609 = vpack.c.b16 %v1585, %v1583
    %v1610 = vpack.c.b16 %v1588, %v1586
    %v1611 = vpack.c.b16 %v1589, %v1587
    %v1612 = vpack.c.b16 %v1592, %v1590
    %v1613 = vpack.c.b16 %v1593, %v1591
    %v1614 = vpack.c.b16 %v1596, %v1594
    %v1615 = vpack.c.b16 %v1597, %v1595
    %v1616 = vpack.c.b16 %v1600, %v1598
    %v1617 = vpack.c.b16 %v1601, %v1599
    %1634 = vmatpush.bf16.msra.mxu0 %v1529
    %1635 = vmatpush.bf16.msra.mxu0 %v1528
    %1636 = vmatpush.bf16.msra.mxu0 %v1527
    %1637 = vmatpush.bf16.msra.mxu0 %v1526
    %1638 = vmatpush.bf16.msra.mxu0 %v1525
    %1639 = vmatpush.bf16.msra.mxu0 %v1524
    %1640 = vmatpush.bf16.msra.mxu0 %v1523
    %1641 = vmatpush.bf16.msra.mxu0 %v1522
    %1642 = vmatmul.bf16.gmra.mxu0 %v1602
    %v1643 = vpop.f32.mrf.mxu0
    %v1644 = vadd.f32 %v1538, %v1643
    %v1645 = vpop.f32.mrf.mxu0
    %v1646 = vadd.f32 %v1539, %v1645
    %1647 = vmatmul.bf16.gmra.mxu0 %v1604
    %v1648 = vpop.f32.mrf.mxu0
    %v1649 = vadd.f32 %v1540, %v1648
    %v1650 = vpop.f32.mrf.mxu0
    %v1651 = vadd.f32 %v1541, %v1650
    %1652 = vmatmul.bf16.gmra.mxu0 %v1606
    %v1653 = vpop.f32.mrf.mxu0
    %v1654 = vadd.f32 %v1542, %v1653
    %v1655 = vpop.f32.mrf.mxu0
    %v1656 = vadd.f32 %v1543, %v1655
    %1657 = vmatmul.bf16.gmra.mxu0 %v1608
    %v1658 = vpop.f32.mrf.mxu0
    %v1659 = vadd.f32 %v1544, %v1658
    %v1660 = vpop.f32.mrf.mxu0
    %v1661 = vadd.f32 %v1545, %v1660
    %1662 = vmatmul.bf16.gmra.mxu0 %v1610
    %v1663 = vpop.f32.mrf.mxu0
    %v1664 = vadd.f32 %v1546, %v1663
    %v1665 = vpop.f32.mrf.mxu0
    %v1666 = vadd.f32 %v1547, %v1665
    %1667 = vmatmul.bf16.gmra.mxu0 %v1612
    %v1668 = vpop.f32.mrf.mxu0
    %v1669 = vadd.f32 %v1548, %v1668
    %v1670 = vpop.f32.mrf.mxu0
    %v1671 = vadd.f32 %v1549, %v1670
    %1672 = vmatmul.bf16.gmra.mxu0 %v1614
    %v1673 = vpop.f32.mrf.mxu0
    %v1674 = vadd.f32 %v1550, %v1673
    %v1675 = vpop.f32.mrf.mxu0
    %v1676 = vadd.f32 %v1551, %v1675
    %1677 = vmatmul.bf16.gmra.mxu0 %v1616
    %v1678 = vpop.f32.mrf.mxu0
    %v1679 = vadd.f32 %v1552, %v1678
    %v1680 = vpop.f32.mrf.mxu0
    %v1681 = vadd.f32 %v1553, %v1680
    %1682 = vdwg.mxu0
    %1683 = vmatpush.bf16.msra.mxu0 %v1537
    %1684 = vmatpush.bf16.msra.mxu0 %v1536
    %1685 = vmatpush.bf16.msra.mxu0 %v1535
    %1686 = vmatpush.bf16.msra.mxu0 %v1534
    %1687 = vmatpush.bf16.msra.mxu0 %v1533
    %1688 = vmatpush.bf16.msra.mxu0 %v1532
    %1689 = vmatpush.bf16.msra.mxu0 %v1531
    %1690 = vmatpush.bf16.msra.mxu0 %v1530
    %1691 = vmatmul.bf16.gmra.mxu0 %v1603
    %v1692 = vpop.f32.mrf.mxu0
    %v1693 = vadd.f32 %v1644, %v1692
    %v1694 = vpop.f32.mrf.mxu0
    %v1695 = vadd.f32 %v1646, %v1694
    %1696 = vmatmul.bf16.gmra.mxu0 %v1605
    %v1697 = vpop.f32.mrf.mxu0
    %v1698 = vadd.f32 %v1649, %v1697
    %v1699 = vpop.f32.mrf.mxu0
    %v1700 = vadd.f32 %v1651, %v1699
    %1701 = vmatmul.bf16.gmra.mxu0 %v1607
    %v1702 = vpop.f32.mrf.mxu0
    %v1703 = vadd.f32 %v1654, %v1702
    %v1704 = vpop.f32.mrf.mxu0
    %v1705 = vadd.f32 %v1656, %v1704
    %1706 = vmatmul.bf16.gmra.mxu0 %v1609
    %v1707 = vpop.f32.mrf.mxu0
    %v1708 = vadd.f32 %v1659, %v1707
    %v1709 = vpop.f32.mrf.mxu0
    %v1710 = vadd.f32 %v1661, %v1709
    %1711 = vmatmul.bf16.gmra.mxu0 %v1611
    %v1712 = vpop.f32.mrf.mxu0
    %v1713 = vadd.f32 %v1664, %v1712
    %v1714 = vpop.f32.mrf.mxu0
    %v1715 = vadd.f32 %v1666, %v1714
    %1716 = vmatmul.bf16.gmra.mxu0 %v1613
    %v1717 = vpop.f32.mrf.mxu0
    %v1718 = vadd.f32 %v1669, %v1717
    %v1719 = vpop.f32.mrf.mxu0
    %v1720 = vadd.f32 %v1671, %v1719
    %1721 = vmatmul.bf16.gmra.mxu0 %v1615
    %v1722 = vpop.f32.mrf.mxu0
    %v1723 = vadd.f32 %v1674, %v1722
    %v1724 = vpop.f32.mrf.mxu0
    %v1725 = vadd.f32 %v1676, %v1724
    %1726 = vmatmul.bf16.gmra.mxu0 %v1617
    %v1727 = vpop.f32.mrf.mxu0
    %v1728 = vadd.f32 %v1679, %v1727
    %v1729 = vpop.f32.mrf.mxu0
    %v1730 = vadd.f32 %v1681, %v1729
    %1731 = vdwg.mxu0
    %vm1732 = vcmp.gt.f32.partialorder %v1693, 0.0
    %vm1733 = vcmp.gt.f32.partialorder %v1695, 0.0
    %vm1734 = vcmp.gt.f32.partialorder %v1698, 0.0
    %vm1735 = vcmp.gt.f32.partialorder %v1700, 0.0
    %vm1736 = vcmp.gt.f32.partialorder %v1703, 0.0
    %vm1737 = vcmp.gt.f32.partialorder %v1705, 0.0
    %vm1738 = vcmp.gt.f32.partialorder %v1708, 0.0
    %vm1739 = vcmp.gt.f32.partialorder %v1710, 0.0
    %vm1740 = vcmp.gt.f32.partialorder %v1713, 0.0
    %vm1741 = vcmp.gt.f32.partialorder %v1715, 0.0
    %vm1742 = vcmp.gt.f32.partialorder %v1718, 0.0
    %vm1743 = vcmp.gt.f32.partialorder %v1720, 0.0
    %vm1744 = vcmp.gt.f32.partialorder %v1723, 0.0
    %vm1745 = vcmp.gt.f32.partialorder %v1725, 0.0
    %vm1746 = vcmp.gt.f32.partialorder %v1728, 0.0
    %vm1747 = vcmp.gt.f32.partialorder %v1730, 0.0
    %v1748 = vmul.f32 %v1693, 0.01
    %v1749 = vmul.f32 %v1695, 0.01
    %v1750 = vmul.f32 %v1698, 0.01
    %v1751 = vmul.f32 %v1700, 0.01
    %v1752 = vmul.f32 %v1703, 0.01
    %v1753 = vmul.f32 %v1705, 0.01
    %v1754 = vmul.f32 %v1708, 0.01
    %v1755 = vmul.f32 %v1710, 0.01
    %v1756 = vmul.f32 %v1713, 0.01
    %v1757 = vmul.f32 %v1715, 0.01
    %v1758 = vmul.f32 %v1718, 0.01
    %v1759 = vmul.f32 %v1720, 0.01
    %v1760 = vmul.f32 %v1723, 0.01
    %v1761 = vmul.f32 %v1725, 0.01
    %v1762 = vmul.f32 %v1728, 0.01
    %v1763 = vmul.f32 %v1730, 0.01
    %v1764 = vsel %vm1732, %v1693, %v1748
    %v1765 = vsel %vm1733, %v1695, %v1749
    %v1766 = vsel %vm1734, %v1698, %v1750
    %v1767 = vsel %vm1735, %v1700, %v1751
    %v1768 = vsel %vm1736, %v1703, %v1752
    %v1769 = vsel %vm1737, %v1705, %v1753
    %v1770 = vsel %vm1738, %v1708, %v1754
    %v1771 = vsel %vm1739, %v1710, %v1755
    %v1772 = vsel %vm1740, %v1713, %v1756
    %v1773 = vsel %vm1741, %v1715, %v1757
    %v1774 = vsel %vm1742, %v1718, %v1758
    %v1775 = vsel %vm1743, %v1720, %v1759
    %v1776 = vsel %vm1744, %v1723, %v1760
    %v1777 = vsel %vm1745, %v1725, %v1761
    %v1778 = vsel %vm1746, %v1728, %v1762
    %v1779 = vsel %vm1747, %v1730, %v1763
    %v1780 = vld [vmem:[#allocation13] sm:$0xff]
    %v1781 = vld [vmem:[#allocation13 + $0x8] sm:$0xff]
    %v1782 = vld [vmem:[#allocation13 + $0x10] sm:$0xff]
    %v1783 = vld [vmem:[#allocation13 + $0x18] sm:$0xff]
    %v1784 = vld [vmem:[#allocation13 + $0x20] sm:$0xff]
    %v1785 = vld [vmem:[#allocation13 + $0x28] sm:$0xff]
    %v1786 = vld [vmem:[#allocation13 + $0x30] sm:$0xff]
    %v1787 = vld [vmem:[#allocation13 + $0x38] sm:$0xff]
    %v1788 = vld [vmem:[#allocation13 + $0x40] sm:$0xff]
    %v1789 = vld [vmem:[#allocation13 + $0x48] sm:$0xff]
    %v1790 = vld [vmem:[#allocation13 + $0x50] sm:$0xff]
    %v1791 = vld [vmem:[#allocation13 + $0x58] sm:$0xff]
    %v1792 = vld [vmem:[#allocation13 + $0x60] sm:$0xff]
    %v1793 = vld [vmem:[#allocation13 + $0x68] sm:$0xff]
    %v1794 = vld [vmem:[#allocation13 + $0x70] sm:$0xff]
    %v1795 = vld [vmem:[#allocation13 + $0x78] sm:$0xff]
    %v1796 = vmul.f32 %v1764, %v1780
    %v1797 = vmul.f32 %v1765, %v1781
    %v1798 = vmul.f32 %v1766, %v1782
    %v1799 = vmul.f32 %v1767, %v1783
    %v1800 = vmul.f32 %v1768, %v1784
    %v1801 = vmul.f32 %v1769, %v1785
    %v1802 = vmul.f32 %v1770, %v1786
    %v1803 = vmul.f32 %v1771, %v1787
    %v1804 = vmul.f32 %v1772, %v1788
    %v1805 = vmul.f32 %v1773, %v1789
    %v1806 = vmul.f32 %v1774, %v1790
    %v1807 = vmul.f32 %v1775, %v1791
    %v1808 = vmul.f32 %v1776, %v1792
    %v1809 = vmul.f32 %v1777, %v1793
    %v1810 = vmul.f32 %v1778, %v1794
    %v1811 = vmul.f32 %v1779, %v1795
    %v1812 = vadd.f32 %v1796, %v1797
    %v1813 = vadd.f32 %v1812, %v1798
    %v1814 = vadd.f32 %v1813, %v1799
    %v1815 = vadd.f32 %v1814, %v1800
    %v1816 = vadd.f32 %v1815, %v1801
    %v1817 = vadd.f32 %v1816, %v1802
    %v1818 = vadd.f32 %v1817, %v1803
    %v1819 = vadd.f32 %v1818, %v1804
    %v1820 = vadd.f32 %v1819, %v1805
    %v1821 = vadd.f32 %v1820, %v1806
    %v1822 = vadd.f32 %v1821, %v1807
    %v1823 = vadd.f32 %v1822, %v1808
    %v1824 = vadd.f32 %v1823, %v1809
    %v1825 = vadd.f32 %v1824, %v1810
    %v1826 = vadd.f32 %v1825, %v1811
    %v1827 = vrot.slane %v1826, 4
    %v1828 = vadd.f32 %v1826, %v1827
    %v1829 = vrot.slane %v1828, 2
    %v1830 = vadd.f32 %v1828, %v1829
    %v1831 = vrot.slane %v1830, 1
    %v1832 = vadd.f32 %v1830, %v1831
    %v1833 = vld [vmem:[%s7] sm:$0x1]
    %v1834 = vadd.f32 %v1832, %v1833
    %1835 = vst [vmem:[#allocation14] sm:$0x1] %v1834
    // Predicated region
    $region62: #{tpu_custom_call.1} parent=1 // pred_check
      _
    $region63: #{tpu_custom_call.1} parent=1 // pred_check_branch
      %1837 = sbr.rel (0) target = $region65
    $region64: #{tpu_custom_call.1} parent=1 // pred_region
      %1839 = vsyncadd [#allocation4], 0
      %s1841 = sshll.u32 [#allocation14], 4
      %s1842 = int_to_ptr.vmem [resolvable:$true] %s1841
      %s1843 = sshll.u32 %s8, 4
      %s1844 = int_to_ptr.hbm [resolvable:$true] %s1843
      %1846 = dma.vmem_to_hbm [thread:$0]  %s1842, 16, %s1844, [#allocation4]
    $region65: #{tpu_custom_call.1} parent=1 // pred_fallthru
      _
    // Predicated region
    $region66: #{tpu_custom_call.1} parent=1 // pred_check
      _
    $region67: #{tpu_custom_call.1} parent=1 // pred_check_branch
      %1848 = sbr.rel (0) target = $region69
    $region68: #{tpu_custom_call.1} parent=1 // pred_region
      %1850 = dma.done [#allocation4], 16
    $region69: #{tpu_custom_call.1} parent=1 // pred_fallthru
      _
    %1851 = vsyncpa [#allocation3], 1
    %1852 = vsyncpa [#allocation6], 1
    %1853 = vsyncpa [#allocation9], 1
    %1854 = vsyncpa [#allocation12], 1
    %1855 = vsyncpa [#allocation4], 1

</llo_original>
